<compile_context>
chip_gen: v7x
topology: tpu7x:2x2x1
jax: 0.10.0
libtpu: 0.0.40
codegen_flags: <defaults>
</compile_context>

<pallas_src>
import jax
import jax.numpy as jnp
from jax import lax
from jax.experimental import pallas as pl
from jax.experimental.pallas import tpu as pltpu


def _double_conv_kernel(x_ref, w1_ref, w2_ref, s1_ref, t1_ref, s2_ref, t2_ref,
                        o_ref, xp1_ref, xp2_ref):
    """Fused DoubleConv for one batch element.

    x_ref  : (1, D, H, W*Cin)        input activation (W folded into lanes)
    w1_ref : (3, 3, W*Cin,  W*Cout)  stage-1 Toeplitz weight (kw + W-pad folded)
    w2_ref : (3, 3, W*Cout, W*Cout)  stage-2 Toeplitz weight
    s*_ref : (1, W*Cout)             folded BN scale (tiled over W)
    t*_ref : (1, W*Cout)             folded BN shift + conv bias (tiled over W)
    o_ref  : (1, D*H, W*Cout)        output activation
    xp1_ref: (D+2, H+2, W*Cin)       VMEM scratch: stage-1 input with D/H halo
    xp2_ref: (D+2, H+2, W*Cout)      VMEM scratch: stage-2 input with D/H halo
    """
    _, D, H, WCin = x_ref.shape
    _, M, WCout = o_ref.shape  # M = D*H

    def conv_stage(xp_ref, w_ref, s_ref, t_ref, K):
        acc = jnp.zeros((M, WCout), jnp.float32)
        # 9 taps over (kd, kh); kw and the W zero-padding live in the weight.
        for kd in range(3):
            for kh in range(3):
                xs = xp_ref[kd:kd + D, kh:kh + H, :].reshape(M, K)
                acc += jnp.dot(xs, w_ref[kd, kh],
                               preferred_element_type=jnp.float32)
        # Folded BatchNorm (eval) + conv bias + ReLU, single FMA epilogue.
        return jnp.maximum(acc * s_ref[...] + t_ref[...], 0.0)

    # ---- stage 1: Conv3d + BN + ReLU ----
    xp1_ref[...] = jnp.zeros_like(xp1_ref)
    xp1_ref[1:D + 1, 1:H + 1, :] = x_ref[0]
    a1 = conv_stage(xp1_ref, w1_ref, s1_ref, t1_ref, WCin)

    # ---- stage 2: Conv3d + BN + ReLU (stage-1 output never leaves VMEM) ----
    xp2_ref[...] = jnp.zeros_like(xp2_ref)
    xp2_ref[1:D + 1, 1:H + 1, :] = a1.reshape(D, H, WCout)
    a2 = conv_stage(xp2_ref, w2_ref, s2_ref, t2_ref, WCout)

    o_ref[0] = a2.astype(o_ref.dtype)


def _toeplitz_weight(w_dhwio, W):
    """(3,3,3,Cin,Cout) -> (3,3,W*Cin,W*Cout).

    Folds the kw taps and the W-axis zero-padding of a pad=1 conv into a
    block-Toeplitz matmul weight: out[.., w*Cout+co] =
      sum_{wi,ci} x[.., wi*Cin+ci] * M[wi*Cin+ci, w*Cout+co],
    with M[wi*Cin+ci, w*Cout+co] = w[kw=wi-w+1, ci, co] when |wi-w| <= 1.
    """
    kD, kH, kW, Cin, Cout = w_dhwio.shape
    assert kW == 3
    m = jnp.zeros((kD, kH, W, Cin, W, Cout), w_dhwio.dtype)
    for w in range(W):
        lo, hi = max(w - 1, 0), min(w + 1, W - 1)
        klo, khi = lo - (w - 1), hi - (w - 1)
        m = m.at[:, :, lo:hi + 1, :, w, :].set(w_dhwio[:, :, klo:khi + 1])
    return m.reshape(kD, kH, W * Cin, W * Cout)


def _fold_bn(bias, gamma, beta, mean, var, W, eps):
    """Fold conv bias + eval-mode BN into per-lane scale/shift, tiled over W."""
    scale = gamma / jnp.sqrt(var + eps)
    shift = beta + (bias - mean) * scale
    Cout = gamma.shape[0]
    return (jnp.tile(scale, W).reshape(1, W * Cout).astype(jnp.float32),
            jnp.tile(shift, W).reshape(1, W * Cout).astype(jnp.float32))


def double_conv(x_ndhwc, params, eps=1e-5):
    """Fused DoubleConv (channels-last input NDHWC)."""
    N, D, H, W, Cin = x_ndhwc.shape
    Cout = params["w1"].shape[-1]
    WCin, WCout = W * Cin, W * Cout

    x2d = x_ndhwc.reshape(N, D, H, WCin)  # fold W,C into the lane axis (free)
    w1m = _toeplitz_weight(params["w1"], W).astype(jnp.float32)
    w2m = _toeplitz_weight(params["w2"], W).astype(jnp.float32)
    s1, t1 = _fold_bn(params["b1"], params["gamma1"], params["beta1"],
                      params["mean1"], params["var1"], W, eps)
    s2, t2 = _fold_bn(params["b2"], params["gamma2"], params["beta2"],
                      params["mean2"], params["var2"], W, eps)

    out = pl.pallas_call(
        _double_conv_kernel,
        out_shape=jax.ShapeDtypeStruct((N, D * H, WCout), jnp.float32),
        grid=(N,),
        in_specs=[
            pl.BlockSpec((1, D, H, WCin), lambda n: (n, 0, 0, 0)),
            pl.BlockSpec((3, 3, WCin, WCout), lambda n: (0, 0, 0, 0)),
            pl.BlockSpec((3, 3, WCout, WCout), lambda n: (0, 0, 0, 0)),
            pl.BlockSpec((1, WCout), lambda n: (0, 0)),
            pl.BlockSpec((1, WCout), lambda n: (0, 0)),
            pl.BlockSpec((1, WCout), lambda n: (0, 0)),
            pl.BlockSpec((1, WCout), lambda n: (0, 0)),
        ],
        out_specs=pl.BlockSpec((1, D * H, WCout), lambda n: (n, 0, 0)),
        scratch_shapes=[
            pltpu.VMEM((D + 2, H + 2, WCin), jnp.float32),
            pltpu.VMEM((D + 2, H + 2, WCout), jnp.float32),
        ],
        compiler_params=pltpu.CompilerParams(
            dimension_semantics=("parallel",)),
    )(x2d, w1m, w2m, s1, t1, s2, t2)

    return out.reshape(N, D, H, W, Cout)


@jax.jit
def inconv_forward(x_ncdhw, params):
    """InConv.forward — input/output in PyTorch NCDHW layout."""
    x = jnp.transpose(x_ncdhw, (0, 2, 3, 4, 1))  # NCDHW -> NDHWC
    x = double_conv(x, params)                   # both conv stages fused
    return jnp.transpose(x, (0, 4, 1, 2, 3))     # NDHWC -> NCDHW


def init_params(key, in_ch, out_ch):
    """Deterministic synthetic params for DoubleConv (two conv+BN blocks)."""
    ks = jax.random.split(key, 12)
    params = {}
    for i, cin in enumerate([in_ch, out_ch]):
        k = ks[6 * i: 6 * (i + 1)]
        fan_in = cin * 27
        bound = 1.0 / jnp.sqrt(fan_in)
        params[f"w{i+1}"] = jax.random.uniform(
            k[0], (3, 3, 3, cin, out_ch), jnp.float32, -bound, bound)  # DHWIO
        params[f"b{i+1}"] = jax.random.uniform(
            k[1], (out_ch,), jnp.float32, -bound, bound)
        params[f"gamma{i+1}"] = 1.0 + 0.1 * jax.random.normal(k[2], (out_ch,), jnp.float32)
        params[f"beta{i+1}"] = 0.1 * jax.random.normal(k[3], (out_ch,), jnp.float32)
        params[f"mean{i+1}"] = 0.1 * jax.random.normal(k[4], (out_ch,), jnp.float32)
        params[f"var{i+1}"] = jnp.abs(jax.random.normal(k[5], (out_ch,), jnp.float32)) + 0.5
    return params


def _reference_forward(x_ncdhw, params, eps=1e-5):
    """Pure-JAX reference (lax.conv) for correctness check."""
    x = jnp.transpose(x_ncdhw, (0, 2, 3, 4, 1))
    dn = lax.conv_dimension_numbers(x.shape, params["w1"].shape,
                                    ("NDHWC", "DHWIO", "NDHWC"))
    for i in (1, 2):
        x = lax.conv_general_dilated(x, params[f"w{i}"], (1, 1, 1),
                                     [(1, 1)] * 3, dimension_numbers=dn)
        x = x + params[f"b{i}"]
        scale = params[f"gamma{i}"] / jnp.sqrt(params[f"var{i}"] + eps)
        x = (x - params[f"mean{i}"]) * scale + params[f"beta{i}"]
        x = jnp.maximum(x, 0.0)
    return jnp.transpose(x, (0, 4, 1, 2, 3))


if __name__ == "__main__":
    key = jax.random.PRNGKey(0)
    k_x, k_p = jax.random.split(key)

    N, Cin, Cout, D, H, W = 2, 4, 8, 4, 8, 8
    x = jax.random.normal(k_x, (N, Cin, D, H, W), jnp.float32)  # NCDHW
    params = init_params(k_p, Cin, Cout)

    out = inconv_forward(x, params)
    out = jax.block_until_ready(out)

    ref = _reference_forward(x, params)
    assert out.shape == (N, Cout, D, H, W)
    assert jnp.allclose(out, ref, atol=1e-4, rtol=1e-4), \
        f"max abs diff {jnp.max(jnp.abs(out - ref))}"

    print("KERNEL_OK")
</pallas_src>

<mosaic_0001>
module attributes {stable_mosaic.version = 11 : i64} {
  func.func @_double_conv_kernel(%arg0: i32, %arg1: memref<1x4x8x32xf32, #tpu.memory_space<vmem>>, %arg2: memref<3x3x32x64xf32, #tpu.memory_space<vmem>>, %arg3: memref<3x3x64x64xf32, #tpu.memory_space<vmem>>, %arg4: memref<1x64xf32, #tpu.memory_space<vmem>>, %arg5: memref<1x64xf32, #tpu.memory_space<vmem>>, %arg6: memref<1x64xf32, #tpu.memory_space<vmem>>, %arg7: memref<1x64xf32, #tpu.memory_space<vmem>>, %arg8: memref<1x32x64xf32, #tpu.memory_space<vmem>>, %arg9: memref<6x10x32xf32, #tpu.memory_space<vmem>>, %arg10: memref<6x10x64xf32, #tpu.memory_space<vmem>>) attributes {dimension_semantics = [#tpu.dimension_semantics<parallel>], iteration_bounds = array<i64: 2>, scalar_prefetch = 0 : i64, scratch_operands = 2 : i64, tpu.core_type = #tpu.core_type<tc>, window_params = [{transform_indices = @transform_0, window_bounds = array<i64: 1, 4, 8, 32>}, {pipeline_mode = #tpu.pipeline_mode<synchronous>, transform_indices = @transform_1, window_bounds = array<i64: 3, 3, 32, 64>}, {pipeline_mode = #tpu.pipeline_mode<synchronous>, transform_indices = @transform_2, window_bounds = array<i64: 3, 3, 64, 64>}, {pipeline_mode = #tpu.pipeline_mode<synchronous>, transform_indices = @transform_3, window_bounds = array<i64: 1, 64>}, {pipeline_mode = #tpu.pipeline_mode<synchronous>, transform_indices = @transform_4, window_bounds = array<i64: 1, 64>}, {pipeline_mode = #tpu.pipeline_mode<synchronous>, transform_indices = @transform_5, window_bounds = array<i64: 1, 64>}, {pipeline_mode = #tpu.pipeline_mode<synchronous>, transform_indices = @transform_6, window_bounds = array<i64: 1, 64>}, {transform_indices = @transform_7, window_bounds = array<i64: 1, 32, 64>}]} {
    %cst = arith.constant 0.000000e+00 : f32
    %0 = vector.broadcast %cst : f32 to vector<6x10x32xf32>
    %c0 = arith.constant 0 : index
    %c0_0 = arith.constant 0 : index
    %c0_1 = arith.constant 0 : index
    %1 = vector.load %arg9[%c0, %c0_0, %c0_1] : memref<6x10x32xf32, #tpu.memory_space<vmem>>, vector<6x10x32xf32>
    tpu.vector_store %arg9[%c0, %c0_0, %c0_1], %0 {strides = array<i32>} : memref<6x10x32xf32, #tpu.memory_space<vmem>>, vector<6x10x32xf32>,
    %c0_2 = arith.constant 0 : index
    %c0_3 = arith.constant 0 : index
    %c0_4 = arith.constant 0 : index
    %c0_5 = arith.constant 0 : index
    %2 = vector.load %arg1[%c0_2, %c0_3, %c0_4, %c0_5] : memref<1x4x8x32xf32, #tpu.memory_space<vmem>>, vector<1x4x8x32xf32>
    %3 = vector.shape_cast %2 : vector<1x4x8x32xf32> to vector<4x8x32xf32>
    %c1 = arith.constant 1 : index
    %c1_6 = arith.constant 1 : index
    %c0_7 = arith.constant 0 : index
    %4 = vector.load %arg9[%c1, %c1_6, %c0_7] : memref<6x10x32xf32, #tpu.memory_space<vmem>>, vector<4x8x32xf32>
    tpu.vector_store %arg9[%c1, %c1_6, %c0_7], %3 {strides = array<i32>} : memref<6x10x32xf32, #tpu.memory_space<vmem>>, vector<4x8x32xf32>,
    %cst_8 = arith.constant 0.000000e+00 : f32
    %5 = vector.broadcast %cst_8 : f32 to vector<32x64xf32>
    %c0_9 = arith.constant 0 : index
    %c0_10 = arith.constant 0 : index
    %c0_11 = arith.constant 0 : index
    %6 = vector.load %arg9[%c0_9, %c0_10, %c0_11] : memref<6x10x32xf32, #tpu.memory_space<vmem>>, vector<4x8x32xf32>
    %7 = vector.shape_cast %6 : vector<4x8x32xf32> to vector<32x32xf32>
    %c0_12 = arith.constant 0 : index
    %c0_13 = arith.constant 0 : index
    %c0_14 = arith.constant 0 : index
    %c0_15 = arith.constant 0 : index
    %8 = vector.load %arg2[%c0_12, %c0_13, %c0_14, %c0_15] : memref<3x3x32x64xf32, #tpu.memory_space<vmem>>, vector<1x1x32x64xf32>
    %9 = vector.shape_cast %8 : vector<1x1x32x64xf32> to vector<32x64xf32>
    %cst_16 = arith.constant dense<0.000000e+00> : vector<32x64xf32>
    %10 = tpu.matmul %7, %9, %cst_16 {dimension_numbers = #tpu.dot_dimension_numbers<[1], [0], [0], [1], [0, 0, 1, 1], [], []>} : vector<32x32xf32>, vector<32x64xf32>, vector<32x64xf32> -> vector<32x64xf32>
    %11 = arith.addf %5, %10 : vector<32x64xf32>
    %c0_17 = arith.constant 0 : index
    %c1_18 = arith.constant 1 : index
    %c0_19 = arith.constant 0 : index
    %12 = vector.load %arg9[%c0_17, %c1_18, %c0_19] : memref<6x10x32xf32, #tpu.memory_space<vmem>>, vector<4x8x32xf32>
    %13 = vector.shape_cast %12 : vector<4x8x32xf32> to vector<32x32xf32>
    %c0_20 = arith.constant 0 : index
    %c1_21 = arith.constant 1 : index
    %c0_22 = arith.constant 0 : index
    %c0_23 = arith.constant 0 : index
    %14 = vector.load %arg2[%c0_20, %c1_21, %c0_22, %c0_23] : memref<3x3x32x64xf32, #tpu.memory_space<vmem>>, vector<1x1x32x64xf32>
    %15 = vector.shape_cast %14 : vector<1x1x32x64xf32> to vector<32x64xf32>
    %cst_24 = arith.constant dense<0.000000e+00> : vector<32x64xf32>
    %16 = tpu.matmul %13, %15, %cst_24 {dimension_numbers = #tpu.dot_dimension_numbers<[1], [0], [0], [1], [0, 0, 1, 1], [], []>} : vector<32x32xf32>, vector<32x64xf32>, vector<32x64xf32> -> vector<32x64xf32>
    %17 = arith.addf %11, %16 : vector<32x64xf32>
    %c0_25 = arith.constant 0 : index
    %c2 = arith.constant 2 : index
    %c0_26 = arith.constant 0 : index
    %18 = vector.load %arg9[%c0_25, %c2, %c0_26] : memref<6x10x32xf32, #tpu.memory_space<vmem>>, vector<4x8x32xf32>
    %19 = vector.shape_cast %18 : vector<4x8x32xf32> to vector<32x32xf32>
    %c0_27 = arith.constant 0 : index
    %c2_28 = arith.constant 2 : index
    %c0_29 = arith.constant 0 : index
    %c0_30 = arith.constant 0 : index
    %20 = vector.load %arg2[%c0_27, %c2_28, %c0_29, %c0_30] : memref<3x3x32x64xf32, #tpu.memory_space<vmem>>, vector<1x1x32x64xf32>
    %21 = vector.shape_cast %20 : vector<1x1x32x64xf32> to vector<32x64xf32>
    %cst_31 = arith.constant dense<0.000000e+00> : vector<32x64xf32>
    %22 = tpu.matmul %19, %21, %cst_31 {dimension_numbers = #tpu.dot_dimension_numbers<[1], [0], [0], [1], [0, 0, 1, 1], [], []>} : vector<32x32xf32>, vector<32x64xf32>, vector<32x64xf32> -> vector<32x64xf32>
    %23 = arith.addf %17, %22 : vector<32x64xf32>
    %c1_32 = arith.constant 1 : index
    %c0_33 = arith.constant 0 : index
    %c0_34 = arith.constant 0 : index
    %24 = vector.load %arg9[%c1_32, %c0_33, %c0_34] : memref<6x10x32xf32, #tpu.memory_space<vmem>>, vector<4x8x32xf32>
    %25 = vector.shape_cast %24 : vector<4x8x32xf32> to vector<32x32xf32>
    %c1_35 = arith.constant 1 : index
    %c0_36 = arith.constant 0 : index
    %c0_37 = arith.constant 0 : index
    %c0_38 = arith.constant 0 : index
    %26 = vector.load %arg2[%c1_35, %c0_36, %c0_37, %c0_38] : memref<3x3x32x64xf32, #tpu.memory_space<vmem>>, vector<1x1x32x64xf32>
    %27 = vector.shape_cast %26 : vector<1x1x32x64xf32> to vector<32x64xf32>
    %cst_39 = arith.constant dense<0.000000e+00> : vector<32x64xf32>
    %28 = tpu.matmul %25, %27, %cst_39 {dimension_numbers = #tpu.dot_dimension_numbers<[1], [0], [0], [1], [0, 0, 1, 1], [], []>} : vector<32x32xf32>, vector<32x64xf32>, vector<32x64xf32> -> vector<32x64xf32>
    %29 = arith.addf %23, %28 : vector<32x64xf32>
    %c1_40 = arith.constant 1 : index
    %c1_41 = arith.constant 1 : index
    %c0_42 = arith.constant 0 : index
    %30 = vector.load %arg9[%c1_40, %c1_41, %c0_42] : memref<6x10x32xf32, #tpu.memory_space<vmem>>, vector<4x8x32xf32>
    %31 = vector.shape_cast %30 : vector<4x8x32xf32> to vector<32x32xf32>
    %c1_43 = arith.constant 1 : index
    %c1_44 = arith.constant 1 : index
    %c0_45 = arith.constant 0 : index
    %c0_46 = arith.constant 0 : index
    %32 = vector.load %arg2[%c1_43, %c1_44, %c0_45, %c0_46] : memref<3x3x32x64xf32, #tpu.memory_space<vmem>>, vector<1x1x32x64xf32>
    %33 = vector.shape_cast %32 : vector<1x1x32x64xf32> to vector<32x64xf32>
    %cst_47 = arith.constant dense<0.000000e+00> : vector<32x64xf32>
    %34 = tpu.matmul %31, %33, %cst_47 {dimension_numbers = #tpu.dot_dimension_numbers<[1], [0], [0], [1], [0, 0, 1, 1], [], []>} : vector<32x32xf32>, vector<32x64xf32>, vector<32x64xf32> -> vector<32x64xf32>
    %35 = arith.addf %29, %34 : vector<32x64xf32>
    %c1_48 = arith.constant 1 : index
    %c2_49 = arith.constant 2 : index
    %c0_50 = arith.constant 0 : index
    %36 = vector.load %arg9[%c1_48, %c2_49, %c0_50] : memref<6x10x32xf32, #tpu.memory_space<vmem>>, vector<4x8x32xf32>
    %37 = vector.shape_cast %36 : vector<4x8x32xf32> to vector<32x32xf32>
    %c1_51 = arith.constant 1 : index
    %c2_52 = arith.constant 2 : index
    %c0_53 = arith.constant 0 : index
    %c0_54 = arith.constant 0 : index
    %38 = vector.load %arg2[%c1_51, %c2_52, %c0_53, %c0_54] : memref<3x3x32x64xf32, #tpu.memory_space<vmem>>, vector<1x1x32x64xf32>
    %39 = vector.shape_cast %38 : vector<1x1x32x64xf32> to vector<32x64xf32>
    %cst_55 = arith.constant dense<0.000000e+00> : vector<32x64xf32>
    %40 = tpu.matmul %37, %39, %cst_55 {dimension_numbers = #tpu.dot_dimension_numbers<[1], [0], [0], [1], [0, 0, 1, 1], [], []>} : vector<32x32xf32>, vector<32x64xf32>, vector<32x64xf32> -> vector<32x64xf32>
    %41 = arith.addf %35, %40 : vector<32x64xf32>
    %c2_56 = arith.constant 2 : index
    %c0_57 = arith.constant 0 : index
    %c0_58 = arith.constant 0 : index
    %42 = vector.load %arg9[%c2_56, %c0_57, %c0_58] : memref<6x10x32xf32, #tpu.memory_space<vmem>>, vector<4x8x32xf32>
    %43 = vector.shape_cast %42 : vector<4x8x32xf32> to vector<32x32xf32>
    %c2_59 = arith.constant 2 : index
    %c0_60 = arith.constant 0 : index
    %c0_61 = arith.constant 0 : index
    %c0_62 = arith.constant 0 : index
    %44 = vector.load %arg2[%c2_59, %c0_60, %c0_61, %c0_62] : memref<3x3x32x64xf32, #tpu.memory_space<vmem>>, vector<1x1x32x64xf32>
    %45 = vector.shape_cast %44 : vector<1x1x32x64xf32> to vector<32x64xf32>
    %cst_63 = arith.constant dense<0.000000e+00> : vector<32x64xf32>
    %46 = tpu.matmul %43, %45, %cst_63 {dimension_numbers = #tpu.dot_dimension_numbers<[1], [0], [0], [1], [0, 0, 1, 1], [], []>} : vector<32x32xf32>, vector<32x64xf32>, vector<32x64xf32> -> vector<32x64xf32>
    %47 = arith.addf %41, %46 : vector<32x64xf32>
    %c2_64 = arith.constant 2 : index
    %c1_65 = arith.constant 1 : index
    %c0_66 = arith.constant 0 : index
    %48 = vector.load %arg9[%c2_64, %c1_65, %c0_66] : memref<6x10x32xf32, #tpu.memory_space<vmem>>, vector<4x8x32xf32>
    %49 = vector.shape_cast %48 : vector<4x8x32xf32> to vector<32x32xf32>
    %c2_67 = arith.constant 2 : index
    %c1_68 = arith.constant 1 : index
    %c0_69 = arith.constant 0 : index
    %c0_70 = arith.constant 0 : index
    %50 = vector.load %arg2[%c2_67, %c1_68, %c0_69, %c0_70] : memref<3x3x32x64xf32, #tpu.memory_space<vmem>>, vector<1x1x32x64xf32>
    %51 = vector.shape_cast %50 : vector<1x1x32x64xf32> to vector<32x64xf32>
    %cst_71 = arith.constant dense<0.000000e+00> : vector<32x64xf32>
    %52 = tpu.matmul %49, %51, %cst_71 {dimension_numbers = #tpu.dot_dimension_numbers<[1], [0], [0], [1], [0, 0, 1, 1], [], []>} : vector<32x32xf32>, vector<32x64xf32>, vector<32x64xf32> -> vector<32x64xf32>
    %53 = arith.addf %47, %52 : vector<32x64xf32>
    %c2_72 = arith.constant 2 : index
    %c2_73 = arith.constant 2 : index
    %c0_74 = arith.constant 0 : index
    %54 = vector.load %arg9[%c2_72, %c2_73, %c0_74] : memref<6x10x32xf32, #tpu.memory_space<vmem>>, vector<4x8x32xf32>
    %55 = vector.shape_cast %54 : vector<4x8x32xf32> to vector<32x32xf32>
    %c2_75 = arith.constant 2 : index
    %c2_76 = arith.constant 2 : index
    %c0_77 = arith.constant 0 : index
    %c0_78 = arith.constant 0 : index
    %56 = vector.load %arg2[%c2_75, %c2_76, %c0_77, %c0_78] : memref<3x3x32x64xf32, #tpu.memory_space<vmem>>, vector<1x1x32x64xf32>
    %57 = vector.shape_cast %56 : vector<1x1x32x64xf32> to vector<32x64xf32>
    %cst_79 = arith.constant dense<0.000000e+00> : vector<32x64xf32>
    %58 = tpu.matmul %55, %57, %cst_79 {dimension_numbers = #tpu.dot_dimension_numbers<[1], [0], [0], [1], [0, 0, 1, 1], [], []>} : vector<32x32xf32>, vector<32x64xf32>, vector<32x64xf32> -> vector<32x64xf32>
    %59 = arith.addf %53, %58 : vector<32x64xf32>
    %c0_80 = arith.constant 0 : index
    %c0_81 = arith.constant 0 : index
    %60 = vector.load %arg4[%c0_80, %c0_81] : memref<1x64xf32, #tpu.memory_space<vmem>>, vector<1x64xf32>
    %61 = vector.broadcast %60 : vector<1x64xf32> to vector<32x64xf32>
    %62 = arith.mulf %59, %61 : vector<32x64xf32>
    %c0_82 = arith.constant 0 : index
    %c0_83 = arith.constant 0 : index
    %63 = vector.load %arg5[%c0_82, %c0_83] : memref<1x64xf32, #tpu.memory_space<vmem>>, vector<1x64xf32>
    %64 = vector.broadcast %63 : vector<1x64xf32> to vector<32x64xf32>
    %65 = arith.addf %62, %64 : vector<32x64xf32>
    %cst_84 = arith.constant 0.000000e+00 : f32
    %66 = vector.broadcast %cst_84 : f32 to vector<32x64xf32>
    %67 = arith.maximumf %65, %66 : vector<32x64xf32>
    %cst_85 = arith.constant 0.000000e+00 : f32
    %68 = vector.broadcast %cst_85 : f32 to vector<6x10x64xf32>
    %c0_86 = arith.constant 0 : index
    %c0_87 = arith.constant 0 : index
    %c0_88 = arith.constant 0 : index
    %69 = vector.load %arg10[%c0_86, %c0_87, %c0_88] : memref<6x10x64xf32, #tpu.memory_space<vmem>>, vector<6x10x64xf32>
    tpu.vector_store %arg10[%c0_86, %c0_87, %c0_88], %68 {strides = array<i32>} : memref<6x10x64xf32, #tpu.memory_space<vmem>>, vector<6x10x64xf32>,
    %70 = vector.shape_cast %67 : vector<32x64xf32> to vector<4x8x64xf32>
    %c1_89 = arith.constant 1 : index
    %c1_90 = arith.constant 1 : index
    %c0_91 = arith.constant 0 : index
    %71 = vector.load %arg10[%c1_89, %c1_90, %c0_91] : memref<6x10x64xf32, #tpu.memory_space<vmem>>, vector<4x8x64xf32>
    tpu.vector_store %arg10[%c1_89, %c1_90, %c0_91], %70 {strides = array<i32>} : memref<6x10x64xf32, #tpu.memory_space<vmem>>, vector<4x8x64xf32>,
    %cst_92 = arith.constant 0.000000e+00 : f32
    %72 = vector.broadcast %cst_92 : f32 to vector<32x64xf32>
    %c0_93 = arith.constant 0 : index
    %c0_94 = arith.constant 0 : index
    %c0_95 = arith.constant 0 : index
    %73 = vector.load %arg10[%c0_93, %c0_94, %c0_95] : memref<6x10x64xf32, #tpu.memory_space<vmem>>, vector<4x8x64xf32>
    %74 = vector.shape_cast %73 : vector<4x8x64xf32> to vector<32x64xf32>
    %c0_96 = arith.constant 0 : index
    %c0_97 = arith.constant 0 : index
    %c0_98 = arith.constant 0 : index
    %c0_99 = arith.constant 0 : index
    %75 = vector.load %arg3[%c0_96, %c0_97, %c0_98, %c0_99] : memref<3x3x64x64xf32, #tpu.memory_space<vmem>>, vector<1x1x64x64xf32>
    %76 = vector.shape_cast %75 : vector<1x1x64x64xf32> to vector<64x64xf32>
    %cst_100 = arith.constant dense<0.000000e+00> : vector<32x64xf32>
    %77 = tpu.matmul %74, %76, %cst_100 {dimension_numbers = #tpu.dot_dimension_numbers<[1], [0], [0], [1], [0, 0, 1, 1], [], []>} : vector<32x64xf32>, vector<64x64xf32>, vector<32x64xf32> -> vector<32x64xf32>
    %78 = arith.addf %72, %77 : vector<32x64xf32>
    %c0_101 = arith.constant 0 : index
    %c1_102 = arith.constant 1 : index
    %c0_103 = arith.constant 0 : index
    %79 = vector.load %arg10[%c0_101, %c1_102, %c0_103] : memref<6x10x64xf32, #tpu.memory_space<vmem>>, vector<4x8x64xf32>
    %80 = vector.shape_cast %79 : vector<4x8x64xf32> to vector<32x64xf32>
    %c0_104 = arith.constant 0 : index
    %c1_105 = arith.constant 1 : index
    %c0_106 = arith.constant 0 : index
    %c0_107 = arith.constant 0 : index
    %81 = vector.load %arg3[%c0_104, %c1_105, %c0_106, %c0_107] : memref<3x3x64x64xf32, #tpu.memory_space<vmem>>, vector<1x1x64x64xf32>
    %82 = vector.shape_cast %81 : vector<1x1x64x64xf32> to vector<64x64xf32>
    %cst_108 = arith.constant dense<0.000000e+00> : vector<32x64xf32>
    %83 = tpu.matmul %80, %82, %cst_108 {dimension_numbers = #tpu.dot_dimension_numbers<[1], [0], [0], [1], [0, 0, 1, 1], [], []>} : vector<32x64xf32>, vector<64x64xf32>, vector<32x64xf32> -> vector<32x64xf32>
    %84 = arith.addf %78, %83 : vector<32x64xf32>
    %c0_109 = arith.constant 0 : index
    %c2_110 = arith.constant 2 : index
    %c0_111 = arith.constant 0 : index
    %85 = vector.load %arg10[%c0_109, %c2_110, %c0_111] : memref<6x10x64xf32, #tpu.memory_space<vmem>>, vector<4x8x64xf32>
    %86 = vector.shape_cast %85 : vector<4x8x64xf32> to vector<32x64xf32>
    %c0_112 = arith.constant 0 : index
    %c2_113 = arith.constant 2 : index
    %c0_114 = arith.constant 0 : index
    %c0_115 = arith.constant 0 : index
    %87 = vector.load %arg3[%c0_112, %c2_113, %c0_114, %c0_115] : memref<3x3x64x64xf32, #tpu.memory_space<vmem>>, vector<1x1x64x64xf32>
    %88 = vector.shape_cast %87 : vector<1x1x64x64xf32> to vector<64x64xf32>
    %cst_116 = arith.constant dense<0.000000e+00> : vector<32x64xf32>
    %89 = tpu.matmul %86, %88, %cst_116 {dimension_numbers = #tpu.dot_dimension_numbers<[1], [0], [0], [1], [0, 0, 1, 1], [], []>} : vector<32x64xf32>, vector<64x64xf32>, vector<32x64xf32> -> vector<32x64xf32>
    %90 = arith.addf %84, %89 : vector<32x64xf32>
    %c1_117 = arith.constant 1 : index
    %c0_118 = arith.constant 0 : index
    %c0_119 = arith.constant 0 : index
    %91 = vector.load %arg10[%c1_117, %c0_118, %c0_119] : memref<6x10x64xf32, #tpu.memory_space<vmem>>, vector<4x8x64xf32>
    %92 = vector.shape_cast %91 : vector<4x8x64xf32> to vector<32x64xf32>
    %c1_120 = arith.constant 1 : index
    %c0_121 = arith.constant 0 : index
    %c0_122 = arith.constant 0 : index
    %c0_123 = arith.constant 0 : index
    %93 = vector.load %arg3[%c1_120, %c0_121, %c0_122, %c0_123] : memref<3x3x64x64xf32, #tpu.memory_space<vmem>>, vector<1x1x64x64xf32>
    %94 = vector.shape_cast %93 : vector<1x1x64x64xf32> to vector<64x64xf32>
    %cst_124 = arith.constant dense<0.000000e+00> : vector<32x64xf32>
    %95 = tpu.matmul %92, %94, %cst_124 {dimension_numbers = #tpu.dot_dimension_numbers<[1], [0], [0], [1], [0, 0, 1, 1], [], []>} : vector<32x64xf32>, vector<64x64xf32>, vector<32x64xf32> -> vector<32x64xf32>
    %96 = arith.addf %90, %95 : vector<32x64xf32>
    %c1_125 = arith.constant 1 : index
    %c1_126 = arith.constant 1 : index
    %c0_127 = arith.constant 0 : index
    %97 = vector.load %arg10[%c1_125, %c1_126, %c0_127] : memref<6x10x64xf32, #tpu.memory_space<vmem>>, vector<4x8x64xf32>
    %98 = vector.shape_cast %97 : vector<4x8x64xf32> to vector<32x64xf32>
    %c1_128 = arith.constant 1 : index
    %c1_129 = arith.constant 1 : index
    %c0_130 = arith.constant 0 : index
    %c0_131 = arith.constant 0 : index
    %99 = vector.load %arg3[%c1_128, %c1_129, %c0_130, %c0_131] : memref<3x3x64x64xf32, #tpu.memory_space<vmem>>, vector<1x1x64x64xf32>
    %100 = vector.shape_cast %99 : vector<1x1x64x64xf32> to vector<64x64xf32>
    %cst_132 = arith.constant dense<0.000000e+00> : vector<32x64xf32>
    %101 = tpu.matmul %98, %100, %cst_132 {dimension_numbers = #tpu.dot_dimension_numbers<[1], [0], [0], [1], [0, 0, 1, 1], [], []>} : vector<32x64xf32>, vector<64x64xf32>, vector<32x64xf32> -> vector<32x64xf32>
    %102 = arith.addf %96, %101 : vector<32x64xf32>
    %c1_133 = arith.constant 1 : index
    %c2_134 = arith.constant 2 : index
    %c0_135 = arith.constant 0 : index
    %103 = vector.load %arg10[%c1_133, %c2_134, %c0_135] : memref<6x10x64xf32, #tpu.memory_space<vmem>>, vector<4x8x64xf32>
    %104 = vector.shape_cast %103 : vector<4x8x64xf32> to vector<32x64xf32>
    %c1_136 = arith.constant 1 : index
    %c2_137 = arith.constant 2 : index
    %c0_138 = arith.constant 0 : index
    %c0_139 = arith.constant 0 : index
    %105 = vector.load %arg3[%c1_136, %c2_137, %c0_138, %c0_139] : memref<3x3x64x64xf32, #tpu.memory_space<vmem>>, vector<1x1x64x64xf32>
    %106 = vector.shape_cast %105 : vector<1x1x64x64xf32> to vector<64x64xf32>
    %cst_140 = arith.constant dense<0.000000e+00> : vector<32x64xf32>
    %107 = tpu.matmul %104, %106, %cst_140 {dimension_numbers = #tpu.dot_dimension_numbers<[1], [0], [0], [1], [0, 0, 1, 1], [], []>} : vector<32x64xf32>, vector<64x64xf32>, vector<32x64xf32> -> vector<32x64xf32>
    %108 = arith.addf %102, %107 : vector<32x64xf32>
    %c2_141 = arith.constant 2 : index
    %c0_142 = arith.constant 0 : index
    %c0_143 = arith.constant 0 : index
    %109 = vector.load %arg10[%c2_141, %c0_142, %c0_143] : memref<6x10x64xf32, #tpu.memory_space<vmem>>, vector<4x8x64xf32>
    %110 = vector.shape_cast %109 : vector<4x8x64xf32> to vector<32x64xf32>
    %c2_144 = arith.constant 2 : index
    %c0_145 = arith.constant 0 : index
    %c0_146 = arith.constant 0 : index
    %c0_147 = arith.constant 0 : index
    %111 = vector.load %arg3[%c2_144, %c0_145, %c0_146, %c0_147] : memref<3x3x64x64xf32, #tpu.memory_space<vmem>>, vector<1x1x64x64xf32>
    %112 = vector.shape_cast %111 : vector<1x1x64x64xf32> to vector<64x64xf32>
    %cst_148 = arith.constant dense<0.000000e+00> : vector<32x64xf32>
    %113 = tpu.matmul %110, %112, %cst_148 {dimension_numbers = #tpu.dot_dimension_numbers<[1], [0], [0], [1], [0, 0, 1, 1], [], []>} : vector<32x64xf32>, vector<64x64xf32>, vector<32x64xf32> -> vector<32x64xf32>
    %114 = arith.addf %108, %113 : vector<32x64xf32>
    %c2_149 = arith.constant 2 : index
    %c1_150 = arith.constant 1 : index
    %c0_151 = arith.constant 0 : index
    %115 = vector.load %arg10[%c2_149, %c1_150, %c0_151] : memref<6x10x64xf32, #tpu.memory_space<vmem>>, vector<4x8x64xf32>
    %116 = vector.shape_cast %115 : vector<4x8x64xf32> to vector<32x64xf32>
    %c2_152 = arith.constant 2 : index
    %c1_153 = arith.constant 1 : index
    %c0_154 = arith.constant 0 : index
    %c0_155 = arith.constant 0 : index
    %117 = vector.load %arg3[%c2_152, %c1_153, %c0_154, %c0_155] : memref<3x3x64x64xf32, #tpu.memory_space<vmem>>, vector<1x1x64x64xf32>
    %118 = vector.shape_cast %117 : vector<1x1x64x64xf32> to vector<64x64xf32>
    %cst_156 = arith.constant dense<0.000000e+00> : vector<32x64xf32>
    %119 = tpu.matmul %116, %118, %cst_156 {dimension_numbers = #tpu.dot_dimension_numbers<[1], [0], [0], [1], [0, 0, 1, 1], [], []>} : vector<32x64xf32>, vector<64x64xf32>, vector<32x64xf32> -> vector<32x64xf32>
    %120 = arith.addf %114, %119 : vector<32x64xf32>
    %c2_157 = arith.constant 2 : index
    %c2_158 = arith.constant 2 : index
    %c0_159 = arith.constant 0 : index
    %121 = vector.load %arg10[%c2_157, %c2_158, %c0_159] : memref<6x10x64xf32, #tpu.memory_space<vmem>>, vector<4x8x64xf32>
    %122 = vector.shape_cast %121 : vector<4x8x64xf32> to vector<32x64xf32>
    %c2_160 = arith.constant 2 : index
    %c2_161 = arith.constant 2 : index
    %c0_162 = arith.constant 0 : index
    %c0_163 = arith.constant 0 : index
    %123 = vector.load %arg3[%c2_160, %c2_161, %c0_162, %c0_163] : memref<3x3x64x64xf32, #tpu.memory_space<vmem>>, vector<1x1x64x64xf32>
    %124 = vector.shape_cast %123 : vector<1x1x64x64xf32> to vector<64x64xf32>
    %cst_164 = arith.constant dense<0.000000e+00> : vector<32x64xf32>
    %125 = tpu.matmul %122, %124, %cst_164 {dimension_numbers = #tpu.dot_dimension_numbers<[1], [0], [0], [1], [0, 0, 1, 1], [], []>} : vector<32x64xf32>, vector<64x64xf32>, vector<32x64xf32> -> vector<32x64xf32>
    %126 = arith.addf %120, %125 : vector<32x64xf32>
    %c0_165 = arith.constant 0 : index
    %c0_166 = arith.constant 0 : index
    %127 = vector.load %arg6[%c0_165, %c0_166] : memref<1x64xf32, #tpu.memory_space<vmem>>, vector<1x64xf32>
    %128 = vector.broadcast %127 : vector<1x64xf32> to vector<32x64xf32>
    %129 = arith.mulf %126, %128 : vector<32x64xf32>
    %c0_167 = arith.constant 0 : index
    %c0_168 = arith.constant 0 : index
    %130 = vector.load %arg7[%c0_167, %c0_168] : memref<1x64xf32, #tpu.memory_space<vmem>>, vector<1x64xf32>
    %131 = vector.broadcast %130 : vector<1x64xf32> to vector<32x64xf32>
    %132 = arith.addf %129, %131 : vector<32x64xf32>
    %cst_169 = arith.constant 0.000000e+00 : f32
    %133 = vector.broadcast %cst_169 : f32 to vector<32x64xf32>
    %134 = arith.maximumf %132, %133 : vector<32x64xf32>
    %c0_170 = arith.constant 0 : index
    %c0_171 = arith.constant 0 : index
    %c0_172 = arith.constant 0 : index
    %135 = vector.load %arg8[%c0_170, %c0_171, %c0_172] : memref<1x32x64xf32, #tpu.memory_space<vmem>>, vector<1x32x64xf32>
    %136 = vector.shape_cast %135 : vector<1x32x64xf32> to vector<32x64xf32>
    %137 = vector.shape_cast %134 : vector<32x64xf32> to vector<1x32x64xf32>
    tpu.vector_store %arg8[%c0_170, %c0_171, %c0_172], %137 {strides = array<i32>} : memref<1x32x64xf32, #tpu.memory_space<vmem>>, vector<1x32x64xf32>,
    return
  }
  func.func @transform_0(%arg0: i32) -> (i32, i32, i32, i32) {
    %c0_i32 = arith.constant 0 : i32
    %c0_i32_0 = arith.constant 0 : i32
    %c0_i32_1 = arith.constant 0 : i32
    %c0_i32_2 = arith.constant 0 : i32
    return %arg0, %c0_i32, %c0_i32_0, %c0_i32_1 : i32, i32, i32, i32
  }
  func.func @transform_1(%arg0: i32) -> (i32, i32, i32, i32) {
    %c0_i32 = arith.constant 0 : i32
    %c0_i32_0 = arith.constant 0 : i32
    %c0_i32_1 = arith.constant 0 : i32
    %c0_i32_2 = arith.constant 0 : i32
    %c0_i32_3 = arith.constant 0 : i32
    return %c0_i32, %c0_i32_0, %c0_i32_1, %c0_i32_2 : i32, i32, i32, i32
  }
  func.func @transform_2(%arg0: i32) -> (i32, i32, i32, i32) {
    %c0_i32 = arith.constant 0 : i32
    %c0_i32_0 = arith.constant 0 : i32
    %c0_i32_1 = arith.constant 0 : i32
    %c0_i32_2 = arith.constant 0 : i32
    %c0_i32_3 = arith.constant 0 : i32
    return %c0_i32, %c0_i32_0, %c0_i32_1, %c0_i32_2 : i32, i32, i32, i32
  }
  func.func @transform_3(%arg0: i32) -> (i32, i32) {
    %c0_i32 = arith.constant 0 : i32
    %c0_i32_0 = arith.constant 0 : i32
    %c0_i32_1 = arith.constant 0 : i32
    return %c0_i32, %c0_i32_0 : i32, i32
  }
  func.func @transform_4(%arg0: i32) -> (i32, i32) {
    %c0_i32 = arith.constant 0 : i32
    %c0_i32_0 = arith.constant 0 : i32
    %c0_i32_1 = arith.constant 0 : i32
    return %c0_i32, %c0_i32_0 : i32, i32
  }
  func.func @transform_5(%arg0: i32) -> (i32, i32) {
    %c0_i32 = arith.constant 0 : i32
    %c0_i32_0 = arith.constant 0 : i32
    %c0_i32_1 = arith.constant 0 : i32
    return %c0_i32, %c0_i32_0 : i32, i32
  }
  func.func @transform_6(%arg0: i32) -> (i32, i32) {
    %c0_i32 = arith.constant 0 : i32
    %c0_i32_0 = arith.constant 0 : i32
    %c0_i32_1 = arith.constant 0 : i32
    return %c0_i32, %c0_i32_0 : i32, i32
  }
  func.func @transform_7(%arg0: i32) -> (i32, i32, i32) {
    %c0_i32 = arith.constant 0 : i32
    %c0_i32_0 = arith.constant 0 : i32
    %c0_i32_1 = arith.constant 0 : i32
    return %arg0, %c0_i32, %c0_i32_0 : i32, i32, i32
  }
}

</mosaic_0001>

<llo_original>
// kernel: tile.23
$region0: #{tile.23}
  #allocation0 [shape = 's32[1]{0}', space=sflag, size = 0x4, scoped, tag = 'scoped memory for tile.23']
  %s0 = inlined_call_operand.vmem [shape: f32[8], index: 0, kind: input, shape index: {}]
  %s1 = inlined_call_operand.vmem [shape: f32[8,8], index: 1, kind: output, shape index: {}]
  // Predicated region
  $region2: #{tile.23} parent=0 // pred_check
    _
  $region3: #{tile.23} parent=0 // pred_check_branch
    %3 = sbr.rel (0) target = $region5
  $region4: #{tile.23} parent=0 // pred_region
    _
  $region5: #{tile.23} parent=0 // pred_fallthru
    _
  %v4 = vld [vmem:[%s0] ss:$0 sm:$0xff]
  %5 = vst [vmem:[%s1] sm:$0xff] %v4

// kernel: tile.24
$region0: #{tile.24}
  %s0 = inlined_call_operand.vmem [shape: f32[8,8], index: 0, kind: input, shape index: {}]
  %s1 = inlined_call_operand.vmem [shape: f32[1,64], index: 1, kind: output, shape index: {}]
  $region1: #{tile.24} parent=0
    #allocation0 [shape = 'u8[4096]{0}', space=vmem, size = 0x1000, scoped, tag = 'scoped mem for output reshape']
    %v2 = vld [vmem:[%s0] sm:$0x1]
    %vm3 = vcmask 64512
    %4 = vst.msk [vmem:[#allocation0] sm:$0x1] %vm3, %v2
    %s5 = scalar_lea.vmem %s0, 7
    %v6 = vld [vmem:[%s5] sm:$0x1]
    %7 = vrot.lane.b32.xlu0 %v6, 56
    %v8 = vpop.permute.xlu0 %7
    %vm9 = vcmask 523712
    %10 = vst.msk [vmem:[#allocation0] sm:$0x1] %vm9, %v8
    %s11 = scalar_lea.vmem %s0, 6
    %v12 = vld [vmem:[%s11] sm:$0x1]
    %13 = vrot.lane.b32.xlu0 %v12, 48
    %v14 = vpop.permute.xlu0 %13
    %vm15 = vcmask 458112
    %16 = vst.msk [vmem:[#allocation0] sm:$0x1] %vm15, %v14
    %s17 = scalar_lea.vmem %s0, 5
    %v18 = vld [vmem:[%s17] sm:$0x1]
    %19 = vrot.lane.b32.xlu0 %v18, 40
    %v20 = vpop.permute.xlu0 %19
    %vm21 = vcmask 392512
    %22 = vst.msk [vmem:[#allocation0] sm:$0x1] %vm21, %v20
    %s23 = scalar_lea.vmem %s0, 4
    %v24 = vld [vmem:[%s23] sm:$0x1]
    %25 = vrot.lane.b32.xlu0 %v24, 32
    %v26 = vpop.permute.xlu0 %25
    %vm27 = vcmask 326912
    %28 = vst.msk [vmem:[#allocation0] sm:$0x1] %vm27, %v26
    %s29 = scalar_lea.vmem %s0, 3
    %v30 = vld [vmem:[%s29] sm:$0x1]
    %31 = vrot.lane.b32.xlu0 %v30, 24
    %v32 = vpop.permute.xlu0 %31
    %vm33 = vcmask 261312
    %34 = vst.msk [vmem:[#allocation0] sm:$0x1] %vm33, %v32
    %s35 = scalar_lea.vmem %s0, 2
    %v36 = vld [vmem:[%s35] sm:$0x1]
    %37 = vrot.lane.b32.xlu0 %v36, 16
    %v38 = vpop.permute.xlu0 %37
    %vm39 = vcmask 195712
    %40 = vst.msk [vmem:[#allocation0] sm:$0x1] %vm39, %v38
    %s41 = scalar_lea.vmem %s0, 1
    %v42 = vld [vmem:[%s41] sm:$0x1]
    %43 = vrot.lane.b32.xlu0 %v42, 8
    %v44 = vpop.permute.xlu0 %43
    %vm45 = vcmask 130112
    %46 = vst.msk [vmem:[#allocation0] sm:$0x1] %vm45, %v44
    %s48 = sshllo.u32 0, 1
    %v50 = vld [vmem:[#allocation0] sm:%s48]
    %s51 = sshllo.u32 0, 1
    %52 = vst [vmem:[%s1] sm:%s51] %v50

// kernel: inconv_forward.1
$region0: #{inconv_forward.1}
  #allocation0 [shape = 'u32[]', space=smem, size = 0x4, offset = 0x4, fixed_abs, tag = 'smem constant byte address 0x4 - core index']
  #allocation1 [shape = 'u32[144,128]{1,0:T(1,128)}', space=vmem, size = 0x12000, scoped, tag = 'internal scratch']
  #allocation2 [shape = 'f32[6,10,32]{2,1,0:T(8,128)}', space=vmem, size = 0xc000, scoped, tag = 'scratch operand']
  #allocation3 [shape = 'f32[6,10,64]{2,1,0:T(8,128)}', space=vmem, size = 0xc000, scoped, tag = 'scratch operand']
  %s0 = inlined_call_operand.vmem [shape: f32[2,4,8,32], index: 0, kind: input, shape index: {}]
  %s1 = inlined_call_operand.vmem [shape: f32[3,3,32,64], index: 1, kind: input, shape index: {}]
  %s2 = inlined_call_operand.vmem [shape: f32[3,3,64,64], index: 2, kind: input, shape index: {}]
  %s3 = inlined_call_operand.vmem [shape: f32[1,64], index: 3, kind: input, shape index: {}]
  %s4 = inlined_call_operand.vmem [shape: f32[1,64], index: 4, kind: input, shape index: {}]
  %s5 = inlined_call_operand.vmem [shape: f32[1,64], index: 5, kind: input, shape index: {}]
  %s6 = inlined_call_operand.vmem [shape: f32[1,64], index: 6, kind: input, shape index: {}]
  %s7 = inlined_call_operand.vmem [shape: f32[2,32,64], index: 7, kind: output, shape index: {}]
  %s8 = sld [smem:[#allocation0]]
  $region61: #{inconv_forward.1} parent=0
    _
  %s10 = ssub.s32 1, %s8
  %s11 = scalar_select 0, %s10, %s8
  loop: start=0, step=1, limit=4
  $region2: #{inconv_forward.1} parent=0 // loop_pre_header
    _
  $region3: #{inconv_forward.1} parent=0 // loop_header
    %s13 = sphi 0, %s17
    %p14 = scmp.ge.s32.totalorder %s13, 4
    %s23 = sphi 0, %s25
    %s26 = sphi 0, %s23
    %s27 = sphi 0, %s26
    %s43 = sphi 0, %s27
    %s47 = sphi 0, %s47
    %s49 = sphi 0, %s47
    %s50 = sphi 0, %s49
    %s64 = sphi 0, %s50
    %s68 = sphi 0, %s68
    %s70 = sphi 0, %s68
    %s71 = sphi 0, %s70
    %s85 = sphi 0, %s71
    %s89 = sphi 0, %s89
    %s91 = sphi 0, %s89
    %s92 = sphi 0, %s91
    %s106 = sphi 0, %s92
    %s110 = sphi 0, %s110
    %s112 = sphi 0, %s110
    %s113 = sphi 0, %s112
    %s127 = sphi 0, %s113
    %s131 = sphi 0, %s131
    %s133 = sphi 0, %s131
    %s134 = sphi 0, %s133
    %s148 = sphi 0, %s134
    %s152 = sphi 0, %s152
    %s154 = sphi 0, %s152
    %s155 = sphi 0, %s154
    %s169 = sphi 0, %s155
    %s175 = sphi 0, %s177
    %s178 = sphi 0, %s175
    %s179 = sphi 0, %s178
    %s195 = sphi 0, %s179
  $region4: #{inconv_forward.1} parent=0 // loop_header_branch
    %16 = sbr.rel (%p14) target = $region8
  $region5: #{inconv_forward.1} parent=0 // loop_body
    %s18 = ssub.s32 %s13, 1
    %s19 = ssub.s32 %s13, 2
    %s20 = sadd.s32 %s13, 1
    %s21 = ssub.s32 %s13, %s20
    %p22 = scmp.eq.s32.totalorder %s21, 0
    %s24 = sadd.s32 %s23, 1
    %s25 = scalar_select %p22, %s23, %s24
    %p28 = pneg %p22
    %p29 = scmp.eq.s32.totalorder %s13, 1
    %p30 = por %p28, %p29
    %p31 = scmp.ne.s32.totalorder %s23, %s26
    %p32 = scmp.eq.s32.totalorder %s13, 0
    %p33 = por %p31, %p32
    %p34 = scmp.ne.s32.totalorder %s23, %s26
    %p35 = scmp.eq.s32.totalorder %s18, 1
    %p36 = por %p34, %p35
    %p37 = scmp.ne.s32.totalorder %s26, %s27
    %p38 = scmp.eq.s32.totalorder %s18, 0
    %p39 = por %p37, %p38
    %p40 = scmp.ne.s32.totalorder %s26, %s27
    %p41 = scmp.eq.s32.totalorder %s19, 1
    %p42 = por %p40, %p41
    %p44 = scmp.ne.s32.totalorder %s27, %s43
    %p45 = scmp.eq.s32.totalorder %s19, 0
    %p46 = por %p44, %p45
    %s48 = sadd.s32 %s47, 1
    %p51 = scmp.eq.s32.totalorder %s13, 1
    %p52 = scmp.ne.s32.totalorder %s47, %s49
    %p53 = scmp.eq.s32.totalorder %s13, 0
    %p54 = por %p52, %p53
    %p55 = scmp.ne.s32.totalorder %s47, %s49
    %p56 = scmp.eq.s32.totalorder %s18, 1
    %p57 = por %p55, %p56
    %p58 = scmp.ne.s32.totalorder %s49, %s50
    %p59 = scmp.eq.s32.totalorder %s18, 0
    %p60 = por %p58, %p59
    %p61 = scmp.ne.s32.totalorder %s49, %s50
    %p62 = scmp.eq.s32.totalorder %s19, 1
    %p63 = por %p61, %p62
    %p65 = scmp.ne.s32.totalorder %s50, %s64
    %p66 = scmp.eq.s32.totalorder %s19, 0
    %p67 = por %p65, %p66
    %s69 = sadd.s32 %s68, 1
    %p72 = scmp.eq.s32.totalorder %s13, 1
    %p73 = scmp.ne.s32.totalorder %s68, %s70
    %p74 = scmp.eq.s32.totalorder %s13, 0
    %p75 = por %p73, %p74
    %p76 = scmp.ne.s32.totalorder %s68, %s70
    %p77 = scmp.eq.s32.totalorder %s18, 1
    %p78 = por %p76, %p77
    %p79 = scmp.ne.s32.totalorder %s70, %s71
    %p80 = scmp.eq.s32.totalorder %s18, 0
    %p81 = por %p79, %p80
    %p82 = scmp.ne.s32.totalorder %s70, %s71
    %p83 = scmp.eq.s32.totalorder %s19, 1
    %p84 = por %p82, %p83
    %p86 = scmp.ne.s32.totalorder %s71, %s85
    %p87 = scmp.eq.s32.totalorder %s19, 0
    %p88 = por %p86, %p87
    %s90 = sadd.s32 %s89, 1
    %p93 = scmp.eq.s32.totalorder %s13, 1
    %p94 = scmp.ne.s32.totalorder %s89, %s91
    %p95 = scmp.eq.s32.totalorder %s13, 0
    %p96 = por %p94, %p95
    %p97 = scmp.ne.s32.totalorder %s89, %s91
    %p98 = scmp.eq.s32.totalorder %s18, 1
    %p99 = por %p97, %p98
    %p100 = scmp.ne.s32.totalorder %s91, %s92
    %p101 = scmp.eq.s32.totalorder %s18, 0
    %p102 = por %p100, %p101
    %p103 = scmp.ne.s32.totalorder %s91, %s92
    %p104 = scmp.eq.s32.totalorder %s19, 1
    %p105 = por %p103, %p104
    %p107 = scmp.ne.s32.totalorder %s92, %s106
    %p108 = scmp.eq.s32.totalorder %s19, 0
    %p109 = por %p107, %p108
    %s111 = sadd.s32 %s110, 1
    %p114 = scmp.eq.s32.totalorder %s13, 1
    %p115 = scmp.ne.s32.totalorder %s110, %s112
    %p116 = scmp.eq.s32.totalorder %s13, 0
    %p117 = por %p115, %p116
    %p118 = scmp.ne.s32.totalorder %s110, %s112
    %p119 = scmp.eq.s32.totalorder %s18, 1
    %p120 = por %p118, %p119
    %p121 = scmp.ne.s32.totalorder %s112, %s113
    %p122 = scmp.eq.s32.totalorder %s18, 0
    %p123 = por %p121, %p122
    %p124 = scmp.ne.s32.totalorder %s112, %s113
    %p125 = scmp.eq.s32.totalorder %s19, 1
    %p126 = por %p124, %p125
    %p128 = scmp.ne.s32.totalorder %s113, %s127
    %p129 = scmp.eq.s32.totalorder %s19, 0
    %p130 = por %p128, %p129
    %s132 = sadd.s32 %s131, 1
    %p135 = scmp.eq.s32.totalorder %s13, 1
    %p136 = scmp.ne.s32.totalorder %s131, %s133
    %p137 = scmp.eq.s32.totalorder %s13, 0
    %p138 = por %p136, %p137
    %p139 = scmp.ne.s32.totalorder %s131, %s133
    %p140 = scmp.eq.s32.totalorder %s18, 1
    %p141 = por %p139, %p140
    %p142 = scmp.ne.s32.totalorder %s133, %s134
    %p143 = scmp.eq.s32.totalorder %s18, 0
    %p144 = por %p142, %p143
    %p145 = scmp.ne.s32.totalorder %s133, %s134
    %p146 = scmp.eq.s32.totalorder %s19, 1
    %p147 = por %p145, %p146
    %p149 = scmp.ne.s32.totalorder %s134, %s148
    %p150 = scmp.eq.s32.totalorder %s19, 0
    %p151 = por %p149, %p150
    %s153 = sadd.s32 %s152, 1
    %p156 = scmp.eq.s32.totalorder %s13, 1
    %p157 = scmp.ne.s32.totalorder %s152, %s154
    %p158 = scmp.eq.s32.totalorder %s13, 0
    %p159 = por %p157, %p158
    %p160 = scmp.ne.s32.totalorder %s152, %s154
    %p161 = scmp.eq.s32.totalorder %s18, 1
    %p162 = por %p160, %p161
    %p163 = scmp.ne.s32.totalorder %s154, %s155
    %p164 = scmp.eq.s32.totalorder %s18, 0
    %p165 = por %p163, %p164
    %p166 = scmp.ne.s32.totalorder %s154, %s155
    %p167 = scmp.eq.s32.totalorder %s19, 1
    %p168 = por %p166, %p167
    %p170 = scmp.ne.s32.totalorder %s155, %s169
    %p171 = scmp.eq.s32.totalorder %s19, 0
    %p172 = por %p170, %p171
    %s173 = ssub.s32 %s13, %s20
    %p174 = scmp.eq.s32.totalorder %s173, 0
    %s176 = sadd.s32 %s175, 1
    %s177 = scalar_select %p174, %s175, %s176
    %p180 = pneg %p174
    %p181 = scmp.eq.s32.totalorder %s13, 1
    %p182 = por %p180, %p181
    %p183 = scmp.ne.s32.totalorder %s175, %s178
    %p184 = scmp.eq.s32.totalorder %s13, 0
    %p185 = por %p183, %p184
    %p186 = scmp.ne.s32.totalorder %s175, %s178
    %p187 = scmp.eq.s32.totalorder %s18, 1
    %p188 = por %p186, %p187
    %p189 = scmp.ne.s32.totalorder %s178, %s179
    %p190 = scmp.eq.s32.totalorder %s18, 0
    %p191 = por %p189, %p190
    %p192 = scmp.ne.s32.totalorder %s178, %s179
    %p193 = scmp.eq.s32.totalorder %s19, 1
    %p194 = por %p192, %p193
    %p196 = scmp.ne.s32.totalorder %s179, %s195
    %p197 = scmp.eq.s32.totalorder %s19, 0
    %p198 = por %p196, %p197
    %p199 = scmp.le.s32.totalorder 1, %s13
    %p200 = scmp.lt.s32.totalorder %s13, 3
    %p201 = pnand %p199, %p200
    %p202 = pneg %p201
    // Predicated region
    $region9: #{inconv_forward.1} parent=5 // pred_check
      _
    $region10: #{inconv_forward.1} parent=5 // pred_check_branch
      %204 = sbr.rel (%p201) target = $region12
    $region11: #{inconv_forward.1} parent=5 // pred_region
      %s205 = ssub.s32 %s13, 1
      // Predicated region
      $region13: #{inconv_forward.1} parent=11 // pred_check
        %p206 = pneg %p60
      $region14: #{inconv_forward.1} parent=11 // pred_check_branch
        %208 = sbr.rel (%p206) target = $region16
      $region15: #{inconv_forward.1} parent=11 // pred_region
        _
      $region16: #{inconv_forward.1} parent=11 // pred_fallthru
        _
      // Predicated region
      $region17: #{inconv_forward.1} parent=11 // pred_check
        %p209 = pneg %p81
      $region18: #{inconv_forward.1} parent=11 // pred_check_branch
        %211 = sbr.rel (%p209) target = $region20
      $region19: #{inconv_forward.1} parent=11 // pred_region
        _
      $region20: #{inconv_forward.1} parent=11 // pred_fallthru
        _
      // Predicated region
      $region21: #{inconv_forward.1} parent=11 // pred_check
        %p212 = pneg %p102
      $region22: #{inconv_forward.1} parent=11 // pred_check_branch
        %214 = sbr.rel (%p212) target = $region24
      $region23: #{inconv_forward.1} parent=11 // pred_region
        _
      $region24: #{inconv_forward.1} parent=11 // pred_fallthru
        _
      // Predicated region
      $region25: #{inconv_forward.1} parent=11 // pred_check
        %p215 = pneg %p123
      $region26: #{inconv_forward.1} parent=11 // pred_check_branch
        %217 = sbr.rel (%p215) target = $region28
      $region27: #{inconv_forward.1} parent=11 // pred_region
        _
      $region28: #{inconv_forward.1} parent=11 // pred_fallthru
        _
      // Predicated region
      $region29: #{inconv_forward.1} parent=11 // pred_check
        %p218 = pneg %p144
      $region30: #{inconv_forward.1} parent=11 // pred_check_branch
        %220 = sbr.rel (%p218) target = $region32
      $region31: #{inconv_forward.1} parent=11 // pred_region
        _
      $region32: #{inconv_forward.1} parent=11 // pred_fallthru
        _
      // Predicated region
      $region33: #{inconv_forward.1} parent=11 // pred_check
        %p221 = pneg %p165
      $region34: #{inconv_forward.1} parent=11 // pred_check_branch
        %223 = sbr.rel (%p221) target = $region36
      $region35: #{inconv_forward.1} parent=11 // pred_region
        _
      $region36: #{inconv_forward.1} parent=11 // pred_fallthru
        _
    $region12: #{inconv_forward.1} parent=5 // pred_fallthru
      _
    %p224 = scmp.lt.s32.totalorder %s13, 2
    // Predicated region
    $region37: #{inconv_forward.1} parent=5 // pred_check
      %p225 = pneg %p224
    $region38: #{inconv_forward.1} parent=5 // pred_check_branch
      %227 = sbr.rel (%p225) target = $region40
    $region39: #{inconv_forward.1} parent=5 // pred_region
      // Predicated region
      $region41: #{inconv_forward.1} parent=39 // pred_check
        %p228 = pneg %p33
      $region42: #{inconv_forward.1} parent=39 // pred_check_branch
        %230 = sbr.rel (%p228) target = $region44
      $region43: #{inconv_forward.1} parent=39 // pred_region
        %p231 = scmp.lt.s32.totalorder %s13, 1
        %s232 = scalar_select %p231, %s13, 1
        %s233 = smul.addr %s232, 4
        %s234 = smul.addr %s233, 8
        %s235 = scalar_lea.vmem %s0, %s234
      $region44: #{inconv_forward.1} parent=39 // pred_fallthru
        _
    $region40: #{inconv_forward.1} parent=5 // pred_fallthru
      _
    %p236 = scmp.le.s32.totalorder 1, %s13
    %p237 = scmp.lt.s32.totalorder %s13, 3
    %p238 = pnand %p236, %p237
    %p239 = pneg %p238
    // Predicated region
    $region45: #{inconv_forward.1} parent=5 // pred_check
      _
    $region46: #{inconv_forward.1} parent=5 // pred_check_branch
      %241 = sbr.rel (%p238) target = $region48
    $region47: #{inconv_forward.1} parent=5 // pred_region
      %s242 = ssub.s32 %s13, 1
      %p243 = scmp.lt.s32.totalorder %s18, 1
      %s244 = scalar_select %p243, %s18, 1
      %s245 = smul.addr %s244, 4
      %s246 = smul.addr %s245, 8
      %s247 = scalar_lea.vmem %s0, %s246
      %p248 = pneg %p39
      %p249 = pneg %p36
      %p250 = pneg %p60
      %p251 = pneg %p57
      %p252 = pneg %p81
      %p253 = pneg %p78
      %p254 = pneg %p102
      %p255 = pneg %p99
      %p256 = pneg %p123
      %p257 = pneg %p120
      %p258 = pneg %p144
      %p259 = pneg %p141
      %p260 = pneg %p165
      %p261 = pneg %p162
      %p262 = pneg %p191
      %p263 = pneg %p188
      %p264 = scmp.lt.s32.totalorder %s18, 1
      %s265 = scalar_select %p264, %s18, 1
      %s266 = smul.addr %s265, 4
      %s267 = smul.addr %s266, 8
      %s268 = scalar_lea.vmem %s7, %s267
      %p269 = scmp.lt.s32.totalorder %s18, 1
      %s270 = scalar_select %p269, %s18, 1
      %s271 = smul.addr %s270, 4
      %s272 = smul.addr %s271, 8
      %s273 = scalar_lea.vmem %s0, %s272
      %p274 = scmp.lt.s32.totalorder %s18, 1
      %s275 = scalar_select %p274, %s18, 1
      %s276 = smul.addr %s275, 4
      %s277 = smul.addr %s276, 8
      %s278 = scalar_lea.vmem %s7, %s277
      %vm279 = vcmask 261120
      %280 = vst.msk [vmem:[#allocation2] sm:$0xff] %vm279, 0.0
      %vm281 = vcmask 254976
      %282 = vst.msk [vmem:[#allocation2 + $0x8] sm:$0x3] %vm281, 0.0
      %283 = vst.msk [vmem:[#allocation2 + $0x10] sm:$0xff] %vm279, 0.0
      %284 = vst.msk [vmem:[#allocation2 + $0x18] sm:$0x3] %vm281, 0.0
      %285 = vst.msk [vmem:[#allocation2 + $0x20] sm:$0xff] %vm279, 0.0
      %286 = vst.msk [vmem:[#allocation2 + $0x28] sm:$0x3] %vm281, 0.0
      %287 = vst.msk [vmem:[#allocation2 + $0x30] sm:$0xff] %vm279, 0.0
      %288 = vst.msk [vmem:[#allocation2 + $0x38] sm:$0x3] %vm281, 0.0
      %289 = vst.msk [vmem:[#allocation2 + $0x40] sm:$0xff] %vm279, 0.0
      %290 = vst.msk [vmem:[#allocation2 + $0x48] sm:$0x3] %vm281, 0.0
      %291 = vst.msk [vmem:[#allocation2 + $0x50] sm:$0xff] %vm279, 0.0
      %292 = vst.msk [vmem:[#allocation2 + $0x58] sm:$0x3] %vm281, 0.0
      %v293 = vld [vmem:[%s273] sm:$0xff]
      %v294 = vld [vmem:[%s273 + $0x8] sm:$0xff]
      %v295 = vld [vmem:[%s273 + $0x10] sm:$0xff]
      %v296 = vld [vmem:[%s273 + $0x18] sm:$0xff]
      %s297 = scalar_lea.vmem [#allocation2], 16
      %298 = vst.msk [vmem:[%s297 + $0x1] sm:$0xff] %vm279, %v293
      %299 = vst.msk [vmem:[%s297 + $0x11] sm:$0xff] %vm279, %v294
      %300 = vst.msk [vmem:[%s297 + $0x21] sm:$0xff] %vm279, %v295
      %301 = vst.msk [vmem:[%s297 + $0x31] sm:$0xff] %vm279, %v296
      %v302 = vld [vmem:[#allocation2] sm:$0xff]
      %v303 = vld [vmem:[#allocation2 + $0x10] sm:$0xff]
      %v304 = vld [vmem:[#allocation2 + $0x20] sm:$0xff]
      %v305 = vld [vmem:[#allocation2 + $0x30] sm:$0xff]
      %v306 = vld [vmem:[%s1] sm:$0xff]
      %v307 = vld [vmem:[%s1 + $0x8] sm:$0xff]
      %v308 = vld [vmem:[%s1 + $0x10] sm:$0xff]
      %v309 = vld [vmem:[%s1 + $0x18] sm:$0xff]
      %v310 = vld [vmem:[#allocation2 + $0x1] sm:$0xff]
      %v311 = vld [vmem:[#allocation2 + $0x11] sm:$0xff]
      %v312 = vld [vmem:[#allocation2 + $0x21] sm:$0xff]
      %v313 = vld [vmem:[#allocation2 + $0x31] sm:$0xff]
      %s314 = scalar_lea.vmem %s1, 32
      %v315 = vld [vmem:[%s314] sm:$0xff]
      %v316 = vld [vmem:[%s314 + $0x8] sm:$0xff]
      %v317 = vld [vmem:[%s314 + $0x10] sm:$0xff]
      %v318 = vld [vmem:[%s314 + $0x18] sm:$0xff]
      %v320 = vsel %vm279, %v310, 0
      %v323 = vsel %vm279, %v311, 0
      %v326 = vsel %vm279, %v312, 0
      %v329 = vsel %vm279, %v313, 0
      %331 = vmatprep.subr.mxu0 0.0
      %332 = vmatpush1.msra.mxu0 %v315
      %333 = vmatprep.subr.mxu0 0.0
      %334 = vmatpush1.msra.mxu0 %v316
      %335 = vmatprep.subr.mxu0 0.0
      %336 = vmatpush1.msra.mxu0 %v317
      %337 = vmatprep.subr.mxu0 0.0
      %338 = vmatpush1.msra.mxu0 %v318
      %339 = vmatprep.subr.mxu0 0.0
      %340 = vmatpush1.msra.mxu0 0.0
      %341 = vmatprep.subr.mxu0 0.0
      %342 = vmatpush1.msra.mxu0 0.0
      %343 = vmatprep.subr.mxu0 0.0
      %344 = vmatpush1.msra.mxu0 0.0
      %345 = vmatprep.subr.mxu0 0.0
      %346 = vmatpush1.msra.mxu0 0.0
      %347 = vmatprep.subr.mxu0 0.0
      %348 = vmatpush1.msra.mxu0 0.0
      %349 = vmatprep.subr.mxu0 0.0
      %350 = vmatpush1.msra.mxu0 0.0
      %351 = vmatprep.subr.mxu0 0.0
      %352 = vmatpush1.msra.mxu0 0.0
      %353 = vmatprep.subr.mxu0 0.0
      %354 = vmatpush1.msra.mxu0 0.0
      %355 = vmatprep.subr.mxu0 0.0
      %356 = vmatpush1.msra.mxu0 0.0
      %357 = vmatprep.subr.mxu0 0.0
      %358 = vmatpush1.msra.mxu0 0.0
      %359 = vmatprep.subr.mxu0 0.0
      %360 = vmatpush1.msra.mxu0 0.0
      %361 = vmatprep.subr.mxu0 0.0
      %362 = vmatpush1.msra.mxu0 0.0
      %363 = vmatprep.subr.mxu0 0.0
      %364 = vmatpush1.msra.mxu0 0.0
      %365 = vmatprep.subr.mxu0 0.0
      %366 = vmatpush1.msra.mxu0 0.0
      %367 = vmatprep.subr.mxu0 0.0
      %368 = vmatpush1.msra.mxu0 0.0
      %369 = vmatprep.subr.mxu0 0.0
      %370 = vmatpush1.msra.mxu0 0.0
      %371 = vmatprep.subr.mxu0 0.0
      %372 = vmatpush1.msra.mxu0 0.0
      %373 = vmatprep.subr.mxu0 0.0
      %374 = vmatpush1.msra.mxu0 0.0
      %375 = vmatprep.subr.mxu0 0.0
      %376 = vmatpush1.msra.mxu0 0.0
      %377 = vmatprep.subr.mxu0 0.0
      %378 = vmatpush1.msra.mxu0 0.0
      %379 = vmatprep.subr.mxu0 0.0
      %380 = vmatpush1.msra.mxu0 0.0
      %381 = vmatprep.subr.mxu0 0.0
      %382 = vmatpush1.msra.mxu0 0.0
      %383 = vmatprep.subr.mxu0 0.0
      %384 = vmatpush1.msra.mxu0 0.0
      %385 = vmatprep.subr.mxu0 0.0
      %386 = vmatpush1.msra.mxu0 0.0
      %387 = vmatprep.subr.mxu0 0.0
      %388 = vmatpush1.msra.mxu0 0.0
      %389 = vmatprep.subr.mxu0 0.0
      %390 = vmatpush1.msra.mxu0 0.0
      %391 = vmatprep.subr.mxu0 0.0
      %392 = vmatpush1.msra.mxu0 0.0
      %393 = vmatprep.subr.mxu0 0.0
      %394 = vmatpush1.msra.mxu0 0.0
      %395 = vmatprep.mubr.f32.mxu0 0.0
      %396 = vmatmul.mubr.f32.gmra.mrb[0].mxu0 %v320
      %v397 = vpop.f32.mrb[0].mxu0
      %v398 = vadd.f32 0.0, %v397
      %v399 = vpop.f32.mrb[0].mxu0
      %400 = vmatprep.mubr.f32.mxu0 0.0
      %401 = vmatmul.mubr.f32.gmra.mrb[0].mxu0 %v323
      %v402 = vpop.f32.mrb[0].mxu0
      %v403 = vadd.f32 0.0, %v402
      %v404 = vpop.f32.mrb[0].mxu0
      %405 = vmatprep.mubr.f32.mxu0 0.0
      %406 = vmatmul.mubr.f32.gmra.mrb[0].mxu0 %v326
      %v407 = vpop.f32.mrb[0].mxu0
      %v408 = vadd.f32 0.0, %v407
      %v409 = vpop.f32.mrb[0].mxu0
      %410 = vmatprep.mubr.f32.mxu0 0.0
      %411 = vmatmul.mubr.f32.gmra.mrb[0].mxu0 %v329
      %v412 = vpop.f32.mrb[0].mxu0
      %v413 = vadd.f32 0.0, %v412
      %v414 = vpop.f32.mrb[0].mxu0
      %415 = vdwg.mxu0
      %v417 = vsel %vm279, %v302, 0
      %v420 = vsel %vm279, %v303, 0
      %v423 = vsel %vm279, %v304, 0
      %v426 = vsel %vm279, %v305, 0
      %428 = vmatprep.subr.mxu0 0.0
      %429 = vmatpush1.msra.mxu0 %v306
      %430 = vmatprep.subr.mxu0 0.0
      %431 = vmatpush1.msra.mxu0 %v307
      %432 = vmatprep.subr.mxu0 0.0
      %433 = vmatpush1.msra.mxu0 %v308
      %434 = vmatprep.subr.mxu0 0.0
      %435 = vmatpush1.msra.mxu0 %v309
      %436 = vmatprep.subr.mxu0 0.0
      %437 = vmatpush1.msra.mxu0 0.0
      %438 = vmatprep.subr.mxu0 0.0
      %439 = vmatpush1.msra.mxu0 0.0
      %440 = vmatprep.subr.mxu0 0.0
      %441 = vmatpush1.msra.mxu0 0.0
      %442 = vmatprep.subr.mxu0 0.0
      %443 = vmatpush1.msra.mxu0 0.0
      %444 = vmatprep.subr.mxu0 0.0
      %445 = vmatpush1.msra.mxu0 0.0
      %446 = vmatprep.subr.mxu0 0.0
      %447 = vmatpush1.msra.mxu0 0.0
      %448 = vmatprep.subr.mxu0 0.0
      %449 = vmatpush1.msra.mxu0 0.0
      %450 = vmatprep.subr.mxu0 0.0
      %451 = vmatpush1.msra.mxu0 0.0
      %452 = vmatprep.subr.mxu0 0.0
      %453 = vmatpush1.msra.mxu0 0.0
      %454 = vmatprep.subr.mxu0 0.0
      %455 = vmatpush1.msra.mxu0 0.0
      %456 = vmatprep.subr.mxu0 0.0
      %457 = vmatpush1.msra.mxu0 0.0
      %458 = vmatprep.subr.mxu0 0.0
      %459 = vmatpush1.msra.mxu0 0.0
      %460 = vmatprep.subr.mxu0 0.0
      %461 = vmatpush1.msra.mxu0 0.0
      %462 = vmatprep.subr.mxu0 0.0
      %463 = vmatpush1.msra.mxu0 0.0
      %464 = vmatprep.subr.mxu0 0.0
      %465 = vmatpush1.msra.mxu0 0.0
      %466 = vmatprep.subr.mxu0 0.0
      %467 = vmatpush1.msra.mxu0 0.0
      %468 = vmatprep.subr.mxu0 0.0
      %469 = vmatpush1.msra.mxu0 0.0
      %470 = vmatprep.subr.mxu0 0.0
      %471 = vmatpush1.msra.mxu0 0.0
      %472 = vmatprep.subr.mxu0 0.0
      %473 = vmatpush1.msra.mxu0 0.0
      %474 = vmatprep.subr.mxu0 0.0
      %475 = vmatpush1.msra.mxu0 0.0
      %476 = vmatprep.subr.mxu0 0.0
      %477 = vmatpush1.msra.mxu0 0.0
      %478 = vmatprep.subr.mxu0 0.0
      %479 = vmatpush1.msra.mxu0 0.0
      %480 = vmatprep.subr.mxu0 0.0
      %481 = vmatpush1.msra.mxu0 0.0
      %482 = vmatprep.subr.mxu0 0.0
      %483 = vmatpush1.msra.mxu0 0.0
      %484 = vmatprep.subr.mxu0 0.0
      %485 = vmatpush1.msra.mxu0 0.0
      %486 = vmatprep.subr.mxu0 0.0
      %487 = vmatpush1.msra.mxu0 0.0
      %488 = vmatprep.subr.mxu0 0.0
      %489 = vmatpush1.msra.mxu0 0.0
      %490 = vmatprep.subr.mxu0 0.0
      %491 = vmatpush1.msra.mxu0 0.0
      %492 = vmatprep.mubr.f32.mxu0 0.0
      %493 = vmatmul.mubr.f32.gmra.mrb[0].mxu0 %v417
      %v494 = vpop.f32.mrb[0].mxu0
      %v495 = vadd.f32 %v398, %v494
      %v496 = vpop.f32.mrb[0].mxu0
      %497 = vmatprep.mubr.f32.mxu0 0.0
      %498 = vmatmul.mubr.f32.gmra.mrb[0].mxu0 %v420
      %v499 = vpop.f32.mrb[0].mxu0
      %v500 = vadd.f32 %v403, %v499
      %v501 = vpop.f32.mrb[0].mxu0
      %502 = vmatprep.mubr.f32.mxu0 0.0
      %503 = vmatmul.mubr.f32.gmra.mrb[0].mxu0 %v423
      %v504 = vpop.f32.mrb[0].mxu0
      %v505 = vadd.f32 %v408, %v504
      %v506 = vpop.f32.mrb[0].mxu0
      %507 = vmatprep.mubr.f32.mxu0 0.0
      %508 = vmatmul.mubr.f32.gmra.mrb[0].mxu0 %v426
      %v509 = vpop.f32.mrb[0].mxu0
      %v510 = vadd.f32 %v413, %v509
      %v511 = vpop.f32.mrb[0].mxu0
      %512 = vdwg.mxu0
      %v513 = vld [vmem:[#allocation2 + $0x2] sm:$0xff]
      %v514 = vld [vmem:[#allocation2 + $0x12] sm:$0xff]
      %v515 = vld [vmem:[#allocation2 + $0x22] sm:$0xff]
      %v516 = vld [vmem:[#allocation2 + $0x32] sm:$0xff]
      %s517 = scalar_lea.vmem %s1, 64
      %v518 = vld [vmem:[%s517] sm:$0xff]
      %v519 = vld [vmem:[%s517 + $0x8] sm:$0xff]
      %v520 = vld [vmem:[%s517 + $0x10] sm:$0xff]
      %v521 = vld [vmem:[%s517 + $0x18] sm:$0xff]
      %v523 = vsel %vm279, %v513, 0
      %v526 = vsel %vm279, %v514, 0
      %v529 = vsel %vm279, %v515, 0
      %v532 = vsel %vm279, %v516, 0
      %534 = vmatprep.subr.mxu0 0.0
      %535 = vmatpush1.msra.mxu0 %v518
      %536 = vmatprep.subr.mxu0 0.0
      %537 = vmatpush1.msra.mxu0 %v519
      %538 = vmatprep.subr.mxu0 0.0
      %539 = vmatpush1.msra.mxu0 %v520
      %540 = vmatprep.subr.mxu0 0.0
      %541 = vmatpush1.msra.mxu0 %v521
      %542 = vmatprep.subr.mxu0 0.0
      %543 = vmatpush1.msra.mxu0 0.0
      %544 = vmatprep.subr.mxu0 0.0
      %545 = vmatpush1.msra.mxu0 0.0
      %546 = vmatprep.subr.mxu0 0.0
      %547 = vmatpush1.msra.mxu0 0.0
      %548 = vmatprep.subr.mxu0 0.0
      %549 = vmatpush1.msra.mxu0 0.0
      %550 = vmatprep.subr.mxu0 0.0
      %551 = vmatpush1.msra.mxu0 0.0
      %552 = vmatprep.subr.mxu0 0.0
      %553 = vmatpush1.msra.mxu0 0.0
      %554 = vmatprep.subr.mxu0 0.0
      %555 = vmatpush1.msra.mxu0 0.0
      %556 = vmatprep.subr.mxu0 0.0
      %557 = vmatpush1.msra.mxu0 0.0
      %558 = vmatprep.subr.mxu0 0.0
      %559 = vmatpush1.msra.mxu0 0.0
      %560 = vmatprep.subr.mxu0 0.0
      %561 = vmatpush1.msra.mxu0 0.0
      %562 = vmatprep.subr.mxu0 0.0
      %563 = vmatpush1.msra.mxu0 0.0
      %564 = vmatprep.subr.mxu0 0.0
      %565 = vmatpush1.msra.mxu0 0.0
      %566 = vmatprep.subr.mxu0 0.0
      %567 = vmatpush1.msra.mxu0 0.0
      %568 = vmatprep.subr.mxu0 0.0
      %569 = vmatpush1.msra.mxu0 0.0
      %570 = vmatprep.subr.mxu0 0.0
      %571 = vmatpush1.msra.mxu0 0.0
      %572 = vmatprep.subr.mxu0 0.0
      %573 = vmatpush1.msra.mxu0 0.0
      %574 = vmatprep.subr.mxu0 0.0
      %575 = vmatpush1.msra.mxu0 0.0
      %576 = vmatprep.subr.mxu0 0.0
      %577 = vmatpush1.msra.mxu0 0.0
      %578 = vmatprep.subr.mxu0 0.0
      %579 = vmatpush1.msra.mxu0 0.0
      %580 = vmatprep.subr.mxu0 0.0
      %581 = vmatpush1.msra.mxu0 0.0
      %582 = vmatprep.subr.mxu0 0.0
      %583 = vmatpush1.msra.mxu0 0.0
      %584 = vmatprep.subr.mxu0 0.0
      %585 = vmatpush1.msra.mxu0 0.0
      %586 = vmatprep.subr.mxu0 0.0
      %587 = vmatpush1.msra.mxu0 0.0
      %588 = vmatprep.subr.mxu0 0.0
      %589 = vmatpush1.msra.mxu0 0.0
      %590 = vmatprep.subr.mxu0 0.0
      %591 = vmatpush1.msra.mxu0 0.0
      %592 = vmatprep.subr.mxu0 0.0
      %593 = vmatpush1.msra.mxu0 0.0
      %594 = vmatprep.subr.mxu0 0.0
      %595 = vmatpush1.msra.mxu0 0.0
      %596 = vmatprep.subr.mxu0 0.0
      %597 = vmatpush1.msra.mxu0 0.0
      %598 = vmatprep.mubr.f32.mxu0 0.0
      %599 = vmatmul.mubr.f32.gmra.mrb[0].mxu0 %v523
      %v600 = vpop.f32.mrb[0].mxu0
      %v601 = vadd.f32 0.0, %v600
      %v602 = vpop.f32.mrb[0].mxu0
      %603 = vmatprep.mubr.f32.mxu0 0.0
      %604 = vmatmul.mubr.f32.gmra.mrb[0].mxu0 %v526
      %v605 = vpop.f32.mrb[0].mxu0
      %v606 = vadd.f32 0.0, %v605
      %v607 = vpop.f32.mrb[0].mxu0
      %608 = vmatprep.mubr.f32.mxu0 0.0
      %609 = vmatmul.mubr.f32.gmra.mrb[0].mxu0 %v529
      %v610 = vpop.f32.mrb[0].mxu0
      %v611 = vadd.f32 0.0, %v610
      %v612 = vpop.f32.mrb[0].mxu0
      %613 = vmatprep.mubr.f32.mxu0 0.0
      %614 = vmatmul.mubr.f32.gmra.mrb[0].mxu0 %v532
      %v615 = vpop.f32.mrb[0].mxu0
      %v616 = vadd.f32 0.0, %v615
      %v617 = vpop.f32.mrb[0].mxu0
      %618 = vdwg.mxu0
      %v619 = vadd.f32 %v495, %v601
      %v620 = vadd.f32 %v500, %v606
      %v621 = vadd.f32 %v505, %v611
      %v622 = vadd.f32 %v510, %v616
      %v623 = vld [vmem:[%s297] sm:$0xff]
      %v624 = vld [vmem:[%s297 + $0x10] sm:$0xff]
      %v625 = vld [vmem:[%s297 + $0x20] sm:$0xff]
      %v626 = vld [vmem:[%s297 + $0x30] sm:$0xff]
      %s627 = scalar_lea.vmem %s1, 96
      %v628 = vld [vmem:[%s627] sm:$0xff]
      %v629 = vld [vmem:[%s627 + $0x8] sm:$0xff]
      %v630 = vld [vmem:[%s627 + $0x10] sm:$0xff]
      %v631 = vld [vmem:[%s627 + $0x18] sm:$0xff]
      %v633 = vsel %vm279, %v623, 0
      %v636 = vsel %vm279, %v624, 0
      %v639 = vsel %vm279, %v625, 0
      %v642 = vsel %vm279, %v626, 0
      %644 = vmatprep.subr.mxu0 0.0
      %645 = vmatpush1.msra.mxu0 %v628
      %646 = vmatprep.subr.mxu0 0.0
      %647 = vmatpush1.msra.mxu0 %v629
      %648 = vmatprep.subr.mxu0 0.0
      %649 = vmatpush1.msra.mxu0 %v630
      %650 = vmatprep.subr.mxu0 0.0
      %651 = vmatpush1.msra.mxu0 %v631
      %652 = vmatprep.subr.mxu0 0.0
      %653 = vmatpush1.msra.mxu0 0.0
      %654 = vmatprep.subr.mxu0 0.0
      %655 = vmatpush1.msra.mxu0 0.0
      %656 = vmatprep.subr.mxu0 0.0
      %657 = vmatpush1.msra.mxu0 0.0
      %658 = vmatprep.subr.mxu0 0.0
      %659 = vmatpush1.msra.mxu0 0.0
      %660 = vmatprep.subr.mxu0 0.0
      %661 = vmatpush1.msra.mxu0 0.0
      %662 = vmatprep.subr.mxu0 0.0
      %663 = vmatpush1.msra.mxu0 0.0
      %664 = vmatprep.subr.mxu0 0.0
      %665 = vmatpush1.msra.mxu0 0.0
      %666 = vmatprep.subr.mxu0 0.0
      %667 = vmatpush1.msra.mxu0 0.0
      %668 = vmatprep.subr.mxu0 0.0
      %669 = vmatpush1.msra.mxu0 0.0
      %670 = vmatprep.subr.mxu0 0.0
      %671 = vmatpush1.msra.mxu0 0.0
      %672 = vmatprep.subr.mxu0 0.0
      %673 = vmatpush1.msra.mxu0 0.0
      %674 = vmatprep.subr.mxu0 0.0
      %675 = vmatpush1.msra.mxu0 0.0
      %676 = vmatprep.subr.mxu0 0.0
      %677 = vmatpush1.msra.mxu0 0.0
      %678 = vmatprep.subr.mxu0 0.0
      %679 = vmatpush1.msra.mxu0 0.0
      %680 = vmatprep.subr.mxu0 0.0
      %681 = vmatpush1.msra.mxu0 0.0
      %682 = vmatprep.subr.mxu0 0.0
      %683 = vmatpush1.msra.mxu0 0.0
      %684 = vmatprep.subr.mxu0 0.0
      %685 = vmatpush1.msra.mxu0 0.0
      %686 = vmatprep.subr.mxu0 0.0
      %687 = vmatpush1.msra.mxu0 0.0
      %688 = vmatprep.subr.mxu0 0.0
      %689 = vmatpush1.msra.mxu0 0.0
      %690 = vmatprep.subr.mxu0 0.0
      %691 = vmatpush1.msra.mxu0 0.0
      %692 = vmatprep.subr.mxu0 0.0
      %693 = vmatpush1.msra.mxu0 0.0
      %694 = vmatprep.subr.mxu0 0.0
      %695 = vmatpush1.msra.mxu0 0.0
      %696 = vmatprep.subr.mxu0 0.0
      %697 = vmatpush1.msra.mxu0 0.0
      %698 = vmatprep.subr.mxu0 0.0
      %699 = vmatpush1.msra.mxu0 0.0
      %700 = vmatprep.subr.mxu0 0.0
      %701 = vmatpush1.msra.mxu0 0.0
      %702 = vmatprep.subr.mxu0 0.0
      %703 = vmatpush1.msra.mxu0 0.0
      %704 = vmatprep.subr.mxu0 0.0
      %705 = vmatpush1.msra.mxu0 0.0
      %706 = vmatprep.subr.mxu0 0.0
      %707 = vmatpush1.msra.mxu0 0.0
      %708 = vmatprep.mubr.f32.mxu0 0.0
      %709 = vmatmul.mubr.f32.gmra.mrb[0].mxu0 %v633
      %v710 = vpop.f32.mrb[0].mxu0
      %v711 = vadd.f32 0.0, %v710
      %v712 = vpop.f32.mrb[0].mxu0
      %713 = vmatprep.mubr.f32.mxu0 0.0
      %714 = vmatmul.mubr.f32.gmra.mrb[0].mxu0 %v636
      %v715 = vpop.f32.mrb[0].mxu0
      %v716 = vadd.f32 0.0, %v715
      %v717 = vpop.f32.mrb[0].mxu0
      %718 = vmatprep.mubr.f32.mxu0 0.0
      %719 = vmatmul.mubr.f32.gmra.mrb[0].mxu0 %v639
      %v720 = vpop.f32.mrb[0].mxu0
      %v721 = vadd.f32 0.0, %v720
      %v722 = vpop.f32.mrb[0].mxu0
      %723 = vmatprep.mubr.f32.mxu0 0.0
      %724 = vmatmul.mubr.f32.gmra.mrb[0].mxu0 %v642
      %v725 = vpop.f32.mrb[0].mxu0
      %v726 = vadd.f32 0.0, %v725
      %v727 = vpop.f32.mrb[0].mxu0
      %728 = vdwg.mxu0
      %v729 = vadd.f32 %v619, %v711
      %v730 = vadd.f32 %v620, %v716
      %v731 = vadd.f32 %v621, %v721
      %v732 = vadd.f32 %v622, %v726
      %v733 = vld [vmem:[%s297 + $0x1] sm:$0xff]
      %v734 = vld [vmem:[%s297 + $0x11] sm:$0xff]
      %v735 = vld [vmem:[%s297 + $0x21] sm:$0xff]
      %v736 = vld [vmem:[%s297 + $0x31] sm:$0xff]
      %s737 = scalar_lea.vmem %s1, 128
      %v738 = vld [vmem:[%s737] sm:$0xff]
      %v739 = vld [vmem:[%s737 + $0x8] sm:$0xff]
      %v740 = vld [vmem:[%s737 + $0x10] sm:$0xff]
      %v741 = vld [vmem:[%s737 + $0x18] sm:$0xff]
      %v743 = vsel %vm279, %v733, 0
      %v746 = vsel %vm279, %v734, 0
      %v749 = vsel %vm279, %v735, 0
      %v752 = vsel %vm279, %v736, 0
      %754 = vmatprep.subr.mxu0 0.0
      %755 = vmatpush1.msra.mxu0 %v738
      %756 = vmatprep.subr.mxu0 0.0
      %757 = vmatpush1.msra.mxu0 %v739
      %758 = vmatprep.subr.mxu0 0.0
      %759 = vmatpush1.msra.mxu0 %v740
      %760 = vmatprep.subr.mxu0 0.0
      %761 = vmatpush1.msra.mxu0 %v741
      %762 = vmatprep.subr.mxu0 0.0
      %763 = vmatpush1.msra.mxu0 0.0
      %764 = vmatprep.subr.mxu0 0.0
      %765 = vmatpush1.msra.mxu0 0.0
      %766 = vmatprep.subr.mxu0 0.0
      %767 = vmatpush1.msra.mxu0 0.0
      %768 = vmatprep.subr.mxu0 0.0
      %769 = vmatpush1.msra.mxu0 0.0
      %770 = vmatprep.subr.mxu0 0.0
      %771 = vmatpush1.msra.mxu0 0.0
      %772 = vmatprep.subr.mxu0 0.0
      %773 = vmatpush1.msra.mxu0 0.0
      %774 = vmatprep.subr.mxu0 0.0
      %775 = vmatpush1.msra.mxu0 0.0
      %776 = vmatprep.subr.mxu0 0.0
      %777 = vmatpush1.msra.mxu0 0.0
      %778 = vmatprep.subr.mxu0 0.0
      %779 = vmatpush1.msra.mxu0 0.0
      %780 = vmatprep.subr.mxu0 0.0
      %781 = vmatpush1.msra.mxu0 0.0
      %782 = vmatprep.subr.mxu0 0.0
      %783 = vmatpush1.msra.mxu0 0.0
      %784 = vmatprep.subr.mxu0 0.0
      %785 = vmatpush1.msra.mxu0 0.0
      %786 = vmatprep.subr.mxu0 0.0
      %787 = vmatpush1.msra.mxu0 0.0
      %788 = vmatprep.subr.mxu0 0.0
      %789 = vmatpush1.msra.mxu0 0.0
      %790 = vmatprep.subr.mxu0 0.0
      %791 = vmatpush1.msra.mxu0 0.0
      %792 = vmatprep.subr.mxu0 0.0
      %793 = vmatpush1.msra.mxu0 0.0
      %794 = vmatprep.subr.mxu0 0.0
      %795 = vmatpush1.msra.mxu0 0.0
      %796 = vmatprep.subr.mxu0 0.0
      %797 = vmatpush1.msra.mxu0 0.0
      %798 = vmatprep.subr.mxu0 0.0
      %799 = vmatpush1.msra.mxu0 0.0
      %800 = vmatprep.subr.mxu0 0.0
      %801 = vmatpush1.msra.mxu0 0.0
      %802 = vmatprep.subr.mxu0 0.0
      %803 = vmatpush1.msra.mxu0 0.0
      %804 = vmatprep.subr.mxu0 0.0
      %805 = vmatpush1.msra.mxu0 0.0
      %806 = vmatprep.subr.mxu0 0.0
      %807 = vmatpush1.msra.mxu0 0.0
      %808 = vmatprep.subr.mxu0 0.0
      %809 = vmatpush1.msra.mxu0 0.0
      %810 = vmatprep.subr.mxu0 0.0
      %811 = vmatpush1.msra.mxu0 0.0
      %812 = vmatprep.subr.mxu0 0.0
      %813 = vmatpush1.msra.mxu0 0.0
      %814 = vmatprep.subr.mxu0 0.0
      %815 = vmatpush1.msra.mxu0 0.0
      %816 = vmatprep.subr.mxu0 0.0
      %817 = vmatpush1.msra.mxu0 0.0
      %818 = vmatprep.mubr.f32.mxu0 0.0
      %819 = vmatmul.mubr.f32.gmra.mrb[0].mxu0 %v743
      %v820 = vpop.f32.mrb[0].mxu0
      %v821 = vadd.f32 0.0, %v820
      %v822 = vpop.f32.mrb[0].mxu0
      %823 = vmatprep.mubr.f32.mxu0 0.0
      %824 = vmatmul.mubr.f32.gmra.mrb[0].mxu0 %v746
      %v825 = vpop.f32.mrb[0].mxu0
      %v826 = vadd.f32 0.0, %v825
      %v827 = vpop.f32.mrb[0].mxu0
      %828 = vmatprep.mubr.f32.mxu0 0.0
      %829 = vmatmul.mubr.f32.gmra.mrb[0].mxu0 %v749
      %v830 = vpop.f32.mrb[0].mxu0
      %v831 = vadd.f32 0.0, %v830
      %v832 = vpop.f32.mrb[0].mxu0
      %833 = vmatprep.mubr.f32.mxu0 0.0
      %834 = vmatmul.mubr.f32.gmra.mrb[0].mxu0 %v752
      %v835 = vpop.f32.mrb[0].mxu0
      %v836 = vadd.f32 0.0, %v835
      %v837 = vpop.f32.mrb[0].mxu0
      %838 = vdwg.mxu0
      %v839 = vadd.f32 %v729, %v821
      %v840 = vadd.f32 %v730, %v826
      %v841 = vadd.f32 %v731, %v831
      %v842 = vadd.f32 %v732, %v836
      %v843 = vld [vmem:[%s297 + $0x2] sm:$0xff]
      %v844 = vld [vmem:[%s297 + $0x12] sm:$0xff]
      %v845 = vld [vmem:[%s297 + $0x22] sm:$0xff]
      %v846 = vld [vmem:[%s297 + $0x32] sm:$0xff]
      %s847 = scalar_lea.vmem %s1, 160
      %v848 = vld [vmem:[%s847] sm:$0xff]
      %v849 = vld [vmem:[%s847 + $0x8] sm:$0xff]
      %v850 = vld [vmem:[%s847 + $0x10] sm:$0xff]
      %v851 = vld [vmem:[%s847 + $0x18] sm:$0xff]
      %v853 = vsel %vm279, %v843, 0
      %v856 = vsel %vm279, %v844, 0
      %v859 = vsel %vm279, %v845, 0
      %v862 = vsel %vm279, %v846, 0
      %864 = vmatprep.subr.mxu0 0.0
      %865 = vmatpush1.msra.mxu0 %v848
      %866 = vmatprep.subr.mxu0 0.0
      %867 = vmatpush1.msra.mxu0 %v849
      %868 = vmatprep.subr.mxu0 0.0
      %869 = vmatpush1.msra.mxu0 %v850
      %870 = vmatprep.subr.mxu0 0.0
      %871 = vmatpush1.msra.mxu0 %v851
      %872 = vmatprep.subr.mxu0 0.0
      %873 = vmatpush1.msra.mxu0 0.0
      %874 = vmatprep.subr.mxu0 0.0
      %875 = vmatpush1.msra.mxu0 0.0
      %876 = vmatprep.subr.mxu0 0.0
      %877 = vmatpush1.msra.mxu0 0.0
      %878 = vmatprep.subr.mxu0 0.0
      %879 = vmatpush1.msra.mxu0 0.0
      %880 = vmatprep.subr.mxu0 0.0
      %881 = vmatpush1.msra.mxu0 0.0
      %882 = vmatprep.subr.mxu0 0.0
      %883 = vmatpush1.msra.mxu0 0.0
      %884 = vmatprep.subr.mxu0 0.0
      %885 = vmatpush1.msra.mxu0 0.0
      %886 = vmatprep.subr.mxu0 0.0
      %887 = vmatpush1.msra.mxu0 0.0
      %888 = vmatprep.subr.mxu0 0.0
      %889 = vmatpush1.msra.mxu0 0.0
      %890 = vmatprep.subr.mxu0 0.0
      %891 = vmatpush1.msra.mxu0 0.0
      %892 = vmatprep.subr.mxu0 0.0
      %893 = vmatpush1.msra.mxu0 0.0
      %894 = vmatprep.subr.mxu0 0.0
      %895 = vmatpush1.msra.mxu0 0.0
      %896 = vmatprep.subr.mxu0 0.0
      %897 = vmatpush1.msra.mxu0 0.0
      %898 = vmatprep.subr.mxu0 0.0
      %899 = vmatpush1.msra.mxu0 0.0
      %900 = vmatprep.subr.mxu0 0.0
      %901 = vmatpush1.msra.mxu0 0.0
      %902 = vmatprep.subr.mxu0 0.0
      %903 = vmatpush1.msra.mxu0 0.0
      %904 = vmatprep.subr.mxu0 0.0
      %905 = vmatpush1.msra.mxu0 0.0
      %906 = vmatprep.subr.mxu0 0.0
      %907 = vmatpush1.msra.mxu0 0.0
      %908 = vmatprep.subr.mxu0 0.0
      %909 = vmatpush1.msra.mxu0 0.0
      %910 = vmatprep.subr.mxu0 0.0
      %911 = vmatpush1.msra.mxu0 0.0
      %912 = vmatprep.subr.mxu0 0.0
      %913 = vmatpush1.msra.mxu0 0.0
      %914 = vmatprep.subr.mxu0 0.0
      %915 = vmatpush1.msra.mxu0 0.0
      %916 = vmatprep.subr.mxu0 0.0
      %917 = vmatpush1.msra.mxu0 0.0
      %918 = vmatprep.subr.mxu0 0.0
      %919 = vmatpush1.msra.mxu0 0.0
      %920 = vmatprep.subr.mxu0 0.0
      %921 = vmatpush1.msra.mxu0 0.0
      %922 = vmatprep.subr.mxu0 0.0
      %923 = vmatpush1.msra.mxu0 0.0
      %924 = vmatprep.subr.mxu0 0.0
      %925 = vmatpush1.msra.mxu0 0.0
      %926 = vmatprep.subr.mxu0 0.0
      %927 = vmatpush1.msra.mxu0 0.0
      %928 = vmatprep.mubr.f32.mxu0 0.0
      %929 = vmatmul.mubr.f32.gmra.mrb[0].mxu0 %v853
      %v930 = vpop.f32.mrb[0].mxu0
      %v931 = vadd.f32 0.0, %v930
      %v932 = vpop.f32.mrb[0].mxu0
      %933 = vmatprep.mubr.f32.mxu0 0.0
      %934 = vmatmul.mubr.f32.gmra.mrb[0].mxu0 %v856
      %v935 = vpop.f32.mrb[0].mxu0
      %v936 = vadd.f32 0.0, %v935
      %v937 = vpop.f32.mrb[0].mxu0
      %938 = vmatprep.mubr.f32.mxu0 0.0
      %939 = vmatmul.mubr.f32.gmra.mrb[0].mxu0 %v859
      %v940 = vpop.f32.mrb[0].mxu0
      %v941 = vadd.f32 0.0, %v940
      %v942 = vpop.f32.mrb[0].mxu0
      %943 = vmatprep.mubr.f32.mxu0 0.0
      %944 = vmatmul.mubr.f32.gmra.mrb[0].mxu0 %v862
      %v945 = vpop.f32.mrb[0].mxu0
      %v946 = vadd.f32 0.0, %v945
      %v947 = vpop.f32.mrb[0].mxu0
      %948 = vdwg.mxu0
      %v949 = vadd.f32 %v839, %v931
      %v950 = vadd.f32 %v840, %v936
      %v951 = vadd.f32 %v841, %v941
      %v952 = vadd.f32 %v842, %v946
      %s953 = scalar_lea.vmem [#allocation2], 32
      %v954 = vld [vmem:[%s953] sm:$0xff]
      %v955 = vld [vmem:[%s953 + $0x10] sm:$0xff]
      %v956 = vld [vmem:[%s953 + $0x20] sm:$0xff]
      %v957 = vld [vmem:[%s953 + $0x30] sm:$0xff]
      %s958 = scalar_lea.vmem %s1, 192
      %v959 = vld [vmem:[%s958] sm:$0xff]
      %v960 = vld [vmem:[%s958 + $0x8] sm:$0xff]
      %v961 = vld [vmem:[%s958 + $0x10] sm:$0xff]
      %v962 = vld [vmem:[%s958 + $0x18] sm:$0xff]
      %v964 = vsel %vm279, %v954, 0
      %v967 = vsel %vm279, %v955, 0
      %v970 = vsel %vm279, %v956, 0
      %v973 = vsel %vm279, %v957, 0
      %975 = vmatprep.subr.mxu0 0.0
      %976 = vmatpush1.msra.mxu0 %v959
      %977 = vmatprep.subr.mxu0 0.0
      %978 = vmatpush1.msra.mxu0 %v960
      %979 = vmatprep.subr.mxu0 0.0
      %980 = vmatpush1.msra.mxu0 %v961
      %981 = vmatprep.subr.mxu0 0.0
      %982 = vmatpush1.msra.mxu0 %v962
      %983 = vmatprep.subr.mxu0 0.0
      %984 = vmatpush1.msra.mxu0 0.0
      %985 = vmatprep.subr.mxu0 0.0
      %986 = vmatpush1.msra.mxu0 0.0
      %987 = vmatprep.subr.mxu0 0.0
      %988 = vmatpush1.msra.mxu0 0.0
      %989 = vmatprep.subr.mxu0 0.0
      %990 = vmatpush1.msra.mxu0 0.0
      %991 = vmatprep.subr.mxu0 0.0
      %992 = vmatpush1.msra.mxu0 0.0
      %993 = vmatprep.subr.mxu0 0.0
      %994 = vmatpush1.msra.mxu0 0.0
      %995 = vmatprep.subr.mxu0 0.0
      %996 = vmatpush1.msra.mxu0 0.0
      %997 = vmatprep.subr.mxu0 0.0
      %998 = vmatpush1.msra.mxu0 0.0
      %999 = vmatprep.subr.mxu0 0.0
      %1000 = vmatpush1.msra.mxu0 0.0
      %1001 = vmatprep.subr.mxu0 0.0
      %1002 = vmatpush1.msra.mxu0 0.0
      %1003 = vmatprep.subr.mxu0 0.0
      %1004 = vmatpush1.msra.mxu0 0.0
      %1005 = vmatprep.subr.mxu0 0.0
      %1006 = vmatpush1.msra.mxu0 0.0
      %1007 = vmatprep.subr.mxu0 0.0
      %1008 = vmatpush1.msra.mxu0 0.0
      %1009 = vmatprep.subr.mxu0 0.0
      %1010 = vmatpush1.msra.mxu0 0.0
      %1011 = vmatprep.subr.mxu0 0.0
      %1012 = vmatpush1.msra.mxu0 0.0
      %1013 = vmatprep.subr.mxu0 0.0
      %1014 = vmatpush1.msra.mxu0 0.0
      %1015 = vmatprep.subr.mxu0 0.0
      %1016 = vmatpush1.msra.mxu0 0.0
      %1017 = vmatprep.subr.mxu0 0.0
      %1018 = vmatpush1.msra.mxu0 0.0
      %1019 = vmatprep.subr.mxu0 0.0
      %1020 = vmatpush1.msra.mxu0 0.0
      %1021 = vmatprep.subr.mxu0 0.0
      %1022 = vmatpush1.msra.mxu0 0.0
      %1023 = vmatprep.subr.mxu0 0.0
      %1024 = vmatpush1.msra.mxu0 0.0
      %1025 = vmatprep.subr.mxu0 0.0
      %1026 = vmatpush1.msra.mxu0 0.0
      %1027 = vmatprep.subr.mxu0 0.0
      %1028 = vmatpush1.msra.mxu0 0.0
      %1029 = vmatprep.subr.mxu0 0.0
      %1030 = vmatpush1.msra.mxu0 0.0
      %1031 = vmatprep.subr.mxu0 0.0
      %1032 = vmatpush1.msra.mxu0 0.0
      %1033 = vmatprep.subr.mxu0 0.0
      %1034 = vmatpush1.msra.mxu0 0.0
      %1035 = vmatprep.subr.mxu0 0.0
      %1036 = vmatpush1.msra.mxu0 0.0
      %1037 = vmatprep.subr.mxu0 0.0
      %1038 = vmatpush1.msra.mxu0 0.0
      %1039 = vmatprep.mubr.f32.mxu0 0.0
      %1040 = vmatmul.mubr.f32.gmra.mrb[0].mxu0 %v964
      %v1041 = vpop.f32.mrb[0].mxu0
      %v1042 = vadd.f32 0.0, %v1041
      %v1043 = vpop.f32.mrb[0].mxu0
      %1044 = vmatprep.mubr.f32.mxu0 0.0
      %1045 = vmatmul.mubr.f32.gmra.mrb[0].mxu0 %v967
      %v1046 = vpop.f32.mrb[0].mxu0
      %v1047 = vadd.f32 0.0, %v1046
      %v1048 = vpop.f32.mrb[0].mxu0
      %1049 = vmatprep.mubr.f32.mxu0 0.0
      %1050 = vmatmul.mubr.f32.gmra.mrb[0].mxu0 %v970
      %v1051 = vpop.f32.mrb[0].mxu0
      %v1052 = vadd.f32 0.0, %v1051
      %v1053 = vpop.f32.mrb[0].mxu0
      %1054 = vmatprep.mubr.f32.mxu0 0.0
      %1055 = vmatmul.mubr.f32.gmra.mrb[0].mxu0 %v973
      %v1056 = vpop.f32.mrb[0].mxu0
      %v1057 = vadd.f32 0.0, %v1056
      %v1058 = vpop.f32.mrb[0].mxu0
      %1059 = vdwg.mxu0
      %v1060 = vadd.f32 %v949, %v1042
      %v1061 = vadd.f32 %v950, %v1047
      %v1062 = vadd.f32 %v951, %v1052
      %v1063 = vadd.f32 %v952, %v1057
      %v1064 = vld [vmem:[%s953 + $0x1] sm:$0xff]
      %v1065 = vld [vmem:[%s953 + $0x11] sm:$0xff]
      %v1066 = vld [vmem:[%s953 + $0x21] sm:$0xff]
      %v1067 = vld [vmem:[%s953 + $0x31] sm:$0xff]
      %s1068 = scalar_lea.vmem %s1, 224
      %v1069 = vld [vmem:[%s1068] sm:$0xff]
      %v1070 = vld [vmem:[%s1068 + $0x8] sm:$0xff]
      %v1071 = vld [vmem:[%s1068 + $0x10] sm:$0xff]
      %v1072 = vld [vmem:[%s1068 + $0x18] sm:$0xff]
      %v1074 = vsel %vm279, %v1064, 0
      %v1077 = vsel %vm279, %v1065, 0
      %v1080 = vsel %vm279, %v1066, 0
      %v1083 = vsel %vm279, %v1067, 0
      %1085 = vmatprep.subr.mxu0 0.0
      %1086 = vmatpush1.msra.mxu0 %v1069
      %1087 = vmatprep.subr.mxu0 0.0
      %1088 = vmatpush1.msra.mxu0 %v1070
      %1089 = vmatprep.subr.mxu0 0.0
      %1090 = vmatpush1.msra.mxu0 %v1071
      %1091 = vmatprep.subr.mxu0 0.0
      %1092 = vmatpush1.msra.mxu0 %v1072
      %1093 = vmatprep.subr.mxu0 0.0
      %1094 = vmatpush1.msra.mxu0 0.0
      %1095 = vmatprep.subr.mxu0 0.0
      %1096 = vmatpush1.msra.mxu0 0.0
      %1097 = vmatprep.subr.mxu0 0.0
      %1098 = vmatpush1.msra.mxu0 0.0
      %1099 = vmatprep.subr.mxu0 0.0
      %1100 = vmatpush1.msra.mxu0 0.0
      %1101 = vmatprep.subr.mxu0 0.0
      %1102 = vmatpush1.msra.mxu0 0.0
      %1103 = vmatprep.subr.mxu0 0.0
      %1104 = vmatpush1.msra.mxu0 0.0
      %1105 = vmatprep.subr.mxu0 0.0
      %1106 = vmatpush1.msra.mxu0 0.0
      %1107 = vmatprep.subr.mxu0 0.0
      %1108 = vmatpush1.msra.mxu0 0.0
      %1109 = vmatprep.subr.mxu0 0.0
      %1110 = vmatpush1.msra.mxu0 0.0
      %1111 = vmatprep.subr.mxu0 0.0
      %1112 = vmatpush1.msra.mxu0 0.0
      %1113 = vmatprep.subr.mxu0 0.0
      %1114 = vmatpush1.msra.mxu0 0.0
      %1115 = vmatprep.subr.mxu0 0.0
      %1116 = vmatpush1.msra.mxu0 0.0
      %1117 = vmatprep.subr.mxu0 0.0
      %1118 = vmatpush1.msra.mxu0 0.0
      %1119 = vmatprep.subr.mxu0 0.0
      %1120 = vmatpush1.msra.mxu0 0.0
      %1121 = vmatprep.subr.mxu0 0.0
      %1122 = vmatpush1.msra.mxu0 0.0
      %1123 = vmatprep.subr.mxu0 0.0
      %1124 = vmatpush1.msra.mxu0 0.0
      %1125 = vmatprep.subr.mxu0 0.0
      %1126 = vmatpush1.msra.mxu0 0.0
      %1127 = vmatprep.subr.mxu0 0.0
      %1128 = vmatpush1.msra.mxu0 0.0
      %1129 = vmatprep.subr.mxu0 0.0
      %1130 = vmatpush1.msra.mxu0 0.0
      %1131 = vmatprep.subr.mxu0 0.0
      %1132 = vmatpush1.msra.mxu0 0.0
      %1133 = vmatprep.subr.mxu0 0.0
      %1134 = vmatpush1.msra.mxu0 0.0
      %1135 = vmatprep.subr.mxu0 0.0
      %1136 = vmatpush1.msra.mxu0 0.0
      %1137 = vmatprep.subr.mxu0 0.0
      %1138 = vmatpush1.msra.mxu0 0.0
      %1139 = vmatprep.subr.mxu0 0.0
      %1140 = vmatpush1.msra.mxu0 0.0
      %1141 = vmatprep.subr.mxu0 0.0
      %1142 = vmatpush1.msra.mxu0 0.0
      %1143 = vmatprep.subr.mxu0 0.0
      %1144 = vmatpush1.msra.mxu0 0.0
      %1145 = vmatprep.subr.mxu0 0.0
      %1146 = vmatpush1.msra.mxu0 0.0
      %1147 = vmatprep.subr.mxu0 0.0
      %1148 = vmatpush1.msra.mxu0 0.0
      %1149 = vmatprep.mubr.f32.mxu0 0.0
      %1150 = vmatmul.mubr.f32.gmra.mrb[0].mxu0 %v1074
      %v1151 = vpop.f32.mrb[0].mxu0
      %v1152 = vadd.f32 0.0, %v1151
      %v1153 = vpop.f32.mrb[0].mxu0
      %1154 = vmatprep.mubr.f32.mxu0 0.0
      %1155 = vmatmul.mubr.f32.gmra.mrb[0].mxu0 %v1077
      %v1156 = vpop.f32.mrb[0].mxu0
      %v1157 = vadd.f32 0.0, %v1156
      %v1158 = vpop.f32.mrb[0].mxu0
      %1159 = vmatprep.mubr.f32.mxu0 0.0
      %1160 = vmatmul.mubr.f32.gmra.mrb[0].mxu0 %v1080
      %v1161 = vpop.f32.mrb[0].mxu0
      %v1162 = vadd.f32 0.0, %v1161
      %v1163 = vpop.f32.mrb[0].mxu0
      %1164 = vmatprep.mubr.f32.mxu0 0.0
      %1165 = vmatmul.mubr.f32.gmra.mrb[0].mxu0 %v1083
      %v1166 = vpop.f32.mrb[0].mxu0
      %v1167 = vadd.f32 0.0, %v1166
      %v1168 = vpop.f32.mrb[0].mxu0
      %1169 = vdwg.mxu0
      %v1170 = vadd.f32 %v1060, %v1152
      %v1171 = vadd.f32 %v1061, %v1157
      %v1172 = vadd.f32 %v1062, %v1162
      %v1173 = vadd.f32 %v1063, %v1167
      %v1174 = vld [vmem:[%s953 + $0x2] sm:$0xff]
      %v1175 = vld [vmem:[%s953 + $0x12] sm:$0xff]
      %v1176 = vld [vmem:[%s953 + $0x22] sm:$0xff]
      %v1177 = vld [vmem:[%s953 + $0x32] sm:$0xff]
      %s1178 = scalar_lea.vmem %s1, 256
      %v1179 = vld [vmem:[%s1178] sm:$0xff]
      %v1180 = vld [vmem:[%s1178 + $0x8] sm:$0xff]
      %v1181 = vld [vmem:[%s1178 + $0x10] sm:$0xff]
      %v1182 = vld [vmem:[%s1178 + $0x18] sm:$0xff]
      %v1184 = vsel %vm279, %v1174, 0
      %v1187 = vsel %vm279, %v1175, 0
      %v1190 = vsel %vm279, %v1176, 0
      %v1193 = vsel %vm279, %v1177, 0
      %1195 = vmatprep.subr.mxu0 0.0
      %1196 = vmatpush1.msra.mxu0 %v1179
      %1197 = vmatprep.subr.mxu0 0.0
      %1198 = vmatpush1.msra.mxu0 %v1180
      %1199 = vmatprep.subr.mxu0 0.0
      %1200 = vmatpush1.msra.mxu0 %v1181
      %1201 = vmatprep.subr.mxu0 0.0
      %1202 = vmatpush1.msra.mxu0 %v1182
      %1203 = vmatprep.subr.mxu0 0.0
      %1204 = vmatpush1.msra.mxu0 0.0
      %1205 = vmatprep.subr.mxu0 0.0
      %1206 = vmatpush1.msra.mxu0 0.0
      %1207 = vmatprep.subr.mxu0 0.0
      %1208 = vmatpush1.msra.mxu0 0.0
      %1209 = vmatprep.subr.mxu0 0.0
      %1210 = vmatpush1.msra.mxu0 0.0
      %1211 = vmatprep.subr.mxu0 0.0
      %1212 = vmatpush1.msra.mxu0 0.0
      %1213 = vmatprep.subr.mxu0 0.0
      %1214 = vmatpush1.msra.mxu0 0.0
      %1215 = vmatprep.subr.mxu0 0.0
      %1216 = vmatpush1.msra.mxu0 0.0
      %1217 = vmatprep.subr.mxu0 0.0
      %1218 = vmatpush1.msra.mxu0 0.0
      %1219 = vmatprep.subr.mxu0 0.0
      %1220 = vmatpush1.msra.mxu0 0.0
      %1221 = vmatprep.subr.mxu0 0.0
      %1222 = vmatpush1.msra.mxu0 0.0
      %1223 = vmatprep.subr.mxu0 0.0
      %1224 = vmatpush1.msra.mxu0 0.0
      %1225 = vmatprep.subr.mxu0 0.0
      %1226 = vmatpush1.msra.mxu0 0.0
      %1227 = vmatprep.subr.mxu0 0.0
      %1228 = vmatpush1.msra.mxu0 0.0
      %1229 = vmatprep.subr.mxu0 0.0
      %1230 = vmatpush1.msra.mxu0 0.0
      %1231 = vmatprep.subr.mxu0 0.0
      %1232 = vmatpush1.msra.mxu0 0.0
      %1233 = vmatprep.subr.mxu0 0.0
      %1234 = vmatpush1.msra.mxu0 0.0
      %1235 = vmatprep.subr.mxu0 0.0
      %1236 = vmatpush1.msra.mxu0 0.0
      %1237 = vmatprep.subr.mxu0 0.0
      %1238 = vmatpush1.msra.mxu0 0.0
      %1239 = vmatprep.subr.mxu0 0.0
      %1240 = vmatpush1.msra.mxu0 0.0
      %1241 = vmatprep.subr.mxu0 0.0
      %1242 = vmatpush1.msra.mxu0 0.0
      %1243 = vmatprep.subr.mxu0 0.0
      %1244 = vmatpush1.msra.mxu0 0.0
      %1245 = vmatprep.subr.mxu0 0.0
      %1246 = vmatpush1.msra.mxu0 0.0
      %1247 = vmatprep.subr.mxu0 0.0
      %1248 = vmatpush1.msra.mxu0 0.0
      %1249 = vmatprep.subr.mxu0 0.0
      %1250 = vmatpush1.msra.mxu0 0.0
      %1251 = vmatprep.subr.mxu0 0.0
      %1252 = vmatpush1.msra.mxu0 0.0
      %1253 = vmatprep.subr.mxu0 0.0
      %1254 = vmatpush1.msra.mxu0 0.0
      %1255 = vmatprep.subr.mxu0 0.0
      %1256 = vmatpush1.msra.mxu0 0.0
      %1257 = vmatprep.subr.mxu0 0.0
      %1258 = vmatpush1.msra.mxu0 0.0
      %1259 = vmatprep.mubr.f32.mxu0 0.0
      %1260 = vmatmul.mubr.f32.gmra.mrb[0].mxu0 %v1184
      %v1261 = vpop.f32.mrb[0].mxu0
      %v1262 = vadd.f32 0.0, %v1261
      %v1263 = vpop.f32.mrb[0].mxu0
      %1264 = vmatprep.mubr.f32.mxu0 0.0
      %1265 = vmatmul.mubr.f32.gmra.mrb[0].mxu0 %v1187
      %v1266 = vpop.f32.mrb[0].mxu0
      %v1267 = vadd.f32 0.0, %v1266
      %v1268 = vpop.f32.mrb[0].mxu0
      %1269 = vmatprep.mubr.f32.mxu0 0.0
      %1270 = vmatmul.mubr.f32.gmra.mrb[0].mxu0 %v1190
      %v1271 = vpop.f32.mrb[0].mxu0
      %v1272 = vadd.f32 0.0, %v1271
      %v1273 = vpop.f32.mrb[0].mxu0
      %1274 = vmatprep.mubr.f32.mxu0 0.0
      %1275 = vmatmul.mubr.f32.gmra.mrb[0].mxu0 %v1193
      %v1276 = vpop.f32.mrb[0].mxu0
      %v1277 = vadd.f32 0.0, %v1276
      %v1278 = vpop.f32.mrb[0].mxu0
      %1279 = vdwg.mxu0
      %v1280 = vadd.f32 %v1170, %v1262
      %v1281 = vadd.f32 %v1171, %v1267
      %v1282 = vadd.f32 %v1172, %v1272
      %v1283 = vadd.f32 %v1173, %v1277
      %v1284 = vld [vmem:[%s3] sm:$0x1]
      %v1286 = vlaneseq
      %v1287 = vshrl.u32 %v1286, 7
      %v1288 = vsub.s32 0, %v1287
      %v1289 = vrot.slane %v1284, %v1288
      %v1291 = vmul.f32 %v1280, %v1289
      %v1292 = vmul.f32 %v1281, %v1289
      %v1293 = vmul.f32 %v1282, %v1289
      %v1294 = vmul.f32 %v1283, %v1289
      %v1295 = vld [vmem:[%s4] sm:$0x1]
      %v1297 = vlaneseq
      %v1298 = vshrl.u32 %v1297, 7
      %v1299 = vsub.s32 0, %v1298
      %v1300 = vrot.slane %v1295, %v1299
      %v1302 = vadd.f32 %v1291, %v1300
      %v1303 = vadd.f32 %v1292, %v1300
      %v1304 = vadd.f32 %v1293, %v1300
      %v1305 = vadd.f32 %v1294, %v1300
      %v1306 = vmax.f32 %v1302, 0.0
      %v1307 = vmax.f32 %v1303, 0.0
      %v1308 = vmax.f32 %v1304, 0.0
      %v1309 = vmax.f32 %v1305, 0.0
      %vm1310 = vcmask 523264
      %1311 = vst.msk [vmem:[#allocation3] sm:$0xff] %vm1310, 0.0
      %vm1312 = vcmask 517120
      %1313 = vst.msk [vmem:[#allocation3 + $0x8] sm:$0x3] %vm1312, 0.0
      %1314 = vst.msk [vmem:[#allocation3 + $0x10] sm:$0xff] %vm1310, 0.0
      %1315 = vst.msk [vmem:[#allocation3 + $0x18] sm:$0x3] %vm1312, 0.0
      %1316 = vst.msk [vmem:[#allocation3 + $0x20] sm:$0xff] %vm1310, 0.0
      %1317 = vst.msk [vmem:[#allocation3 + $0x28] sm:$0x3] %vm1312, 0.0
      %1318 = vst.msk [vmem:[#allocation3 + $0x30] sm:$0xff] %vm1310, 0.0
      %1319 = vst.msk [vmem:[#allocation3 + $0x38] sm:$0x3] %vm1312, 0.0
      %1320 = vst.msk [vmem:[#allocation3 + $0x40] sm:$0xff] %vm1310, 0.0
      %1321 = vst.msk [vmem:[#allocation3 + $0x48] sm:$0x3] %vm1312, 0.0
      %1322 = vst.msk [vmem:[#allocation3 + $0x50] sm:$0xff] %vm1310, 0.0
      %1323 = vst.msk [vmem:[#allocation3 + $0x58] sm:$0x3] %vm1312, 0.0
      %s1324 = scalar_lea.vmem [#allocation3], 16
      %1325 = vst.msk [vmem:[%s1324 + $0x1] sm:$0xff] %vm1310, %v1306
      %1326 = vst.msk [vmem:[%s1324 + $0x11] sm:$0xff] %vm1310, %v1307
      %1327 = vst.msk [vmem:[%s1324 + $0x21] sm:$0xff] %vm1310, %v1308
      %1328 = vst.msk [vmem:[%s1324 + $0x31] sm:$0xff] %vm1310, %v1309
      %v1329 = vld [vmem:[#allocation3] sm:$0xff]
      %v1330 = vld [vmem:[#allocation3 + $0x10] sm:$0xff]
      %v1331 = vld [vmem:[#allocation3 + $0x20] sm:$0xff]
      %v1332 = vld [vmem:[#allocation3 + $0x30] sm:$0xff]
      %v1333 = vld [vmem:[%s2] sm:$0xff]
      %v1334 = vld [vmem:[%s2 + $0x8] sm:$0xff]
      %v1335 = vld [vmem:[%s2 + $0x10] sm:$0xff]
      %v1336 = vld [vmem:[%s2 + $0x18] sm:$0xff]
      %v1337 = vld [vmem:[%s2 + $0x20] sm:$0xff]
      %v1338 = vld [vmem:[%s2 + $0x28] sm:$0xff]
      %v1339 = vld [vmem:[%s2 + $0x30] sm:$0xff]
      %v1340 = vld [vmem:[%s2 + $0x38] sm:$0xff]
      %v1341 = vld [vmem:[#allocation3 + $0x1] sm:$0xff]
      %v1342 = vld [vmem:[#allocation3 + $0x11] sm:$0xff]
      %v1343 = vld [vmem:[#allocation3 + $0x21] sm:$0xff]
      %v1344 = vld [vmem:[#allocation3 + $0x31] sm:$0xff]
      %s1345 = scalar_lea.vmem %s2, 64
      %v1346 = vld [vmem:[%s1345] sm:$0xff]
      %v1347 = vld [vmem:[%s1345 + $0x8] sm:$0xff]
      %v1348 = vld [vmem:[%s1345 + $0x10] sm:$0xff]
      %v1349 = vld [vmem:[%s1345 + $0x18] sm:$0xff]
      %v1350 = vld [vmem:[%s1345 + $0x20] sm:$0xff]
      %v1351 = vld [vmem:[%s1345 + $0x28] sm:$0xff]
      %v1352 = vld [vmem:[%s1345 + $0x30] sm:$0xff]
      %v1353 = vld [vmem:[%s1345 + $0x38] sm:$0xff]
      %v1355 = vsel %vm1310, %v1341, 0
      %v1358 = vsel %vm1310, %v1342, 0
      %v1361 = vsel %vm1310, %v1343, 0
      %v1364 = vsel %vm1310, %v1344, 0
      %1366 = vmatprep.subr.mxu0 0.0
      %1367 = vmatpush1.msra.mxu0 %v1346
      %1368 = vmatprep.subr.mxu0 0.0
      %1369 = vmatpush1.msra.mxu0 %v1347
      %1370 = vmatprep.subr.mxu0 0.0
      %1371 = vmatpush1.msra.mxu0 %v1348
      %1372 = vmatprep.subr.mxu0 0.0
      %1373 = vmatpush1.msra.mxu0 %v1349
      %1374 = vmatprep.subr.mxu0 0.0
      %1375 = vmatpush1.msra.mxu0 %v1350
      %1376 = vmatprep.subr.mxu0 0.0
      %1377 = vmatpush1.msra.mxu0 %v1351
      %1378 = vmatprep.subr.mxu0 0.0
      %1379 = vmatpush1.msra.mxu0 %v1352
      %1380 = vmatprep.subr.mxu0 0.0
      %1381 = vmatpush1.msra.mxu0 %v1353
      %1382 = vmatprep.subr.mxu0 0.0
      %1383 = vmatpush1.msra.mxu0 0.0
      %1384 = vmatprep.subr.mxu0 0.0
      %1385 = vmatpush1.msra.mxu0 0.0
      %1386 = vmatprep.subr.mxu0 0.0
      %1387 = vmatpush1.msra.mxu0 0.0
      %1388 = vmatprep.subr.mxu0 0.0
      %1389 = vmatpush1.msra.mxu0 0.0
      %1390 = vmatprep.subr.mxu0 0.0
      %1391 = vmatpush1.msra.mxu0 0.0
      %1392 = vmatprep.subr.mxu0 0.0
      %1393 = vmatpush1.msra.mxu0 0.0
      %1394 = vmatprep.subr.mxu0 0.0
      %1395 = vmatpush1.msra.mxu0 0.0
      %1396 = vmatprep.subr.mxu0 0.0
      %1397 = vmatpush1.msra.mxu0 0.0
      %1398 = vmatprep.subr.mxu0 0.0
      %1399 = vmatpush1.msra.mxu0 0.0
      %1400 = vmatprep.subr.mxu0 0.0
      %1401 = vmatpush1.msra.mxu0 0.0
      %1402 = vmatprep.subr.mxu0 0.0
      %1403 = vmatpush1.msra.mxu0 0.0
      %1404 = vmatprep.subr.mxu0 0.0
      %1405 = vmatpush1.msra.mxu0 0.0
      %1406 = vmatprep.subr.mxu0 0.0
      %1407 = vmatpush1.msra.mxu0 0.0
      %1408 = vmatprep.subr.mxu0 0.0
      %1409 = vmatpush1.msra.mxu0 0.0
      %1410 = vmatprep.subr.mxu0 0.0
      %1411 = vmatpush1.msra.mxu0 0.0
      %1412 = vmatprep.subr.mxu0 0.0
      %1413 = vmatpush1.msra.mxu0 0.0
      %1414 = vmatprep.subr.mxu0 0.0
      %1415 = vmatpush1.msra.mxu0 0.0
      %1416 = vmatprep.subr.mxu0 0.0
      %1417 = vmatpush1.msra.mxu0 0.0
      %1418 = vmatprep.subr.mxu0 0.0
      %1419 = vmatpush1.msra.mxu0 0.0
      %1420 = vmatprep.subr.mxu0 0.0
      %1421 = vmatpush1.msra.mxu0 0.0
      %1422 = vmatprep.subr.mxu0 0.0
      %1423 = vmatpush1.msra.mxu0 0.0
      %1424 = vmatprep.subr.mxu0 0.0
      %1425 = vmatpush1.msra.mxu0 0.0
      %1426 = vmatprep.subr.mxu0 0.0
      %1427 = vmatpush1.msra.mxu0 0.0
      %1428 = vmatprep.subr.mxu0 0.0
      %1429 = vmatpush1.msra.mxu0 0.0
      %1430 = vmatprep.mubr.f32.mxu0 0.0
      %1431 = vmatmul.mubr.f32.gmra.mrb[0].mxu0 %v1355
      %v1432 = vpop.f32.mrb[0].mxu0
      %v1433 = vadd.f32 0.0, %v1432
      %v1434 = vpop.f32.mrb[0].mxu0
      %1435 = vmatprep.mubr.f32.mxu0 0.0
      %1436 = vmatmul.mubr.f32.gmra.mrb[0].mxu0 %v1358
      %v1437 = vpop.f32.mrb[0].mxu0
      %v1438 = vadd.f32 0.0, %v1437
      %v1439 = vpop.f32.mrb[0].mxu0
      %1440 = vmatprep.mubr.f32.mxu0 0.0
      %1441 = vmatmul.mubr.f32.gmra.mrb[0].mxu0 %v1361
      %v1442 = vpop.f32.mrb[0].mxu0
      %v1443 = vadd.f32 0.0, %v1442
      %v1444 = vpop.f32.mrb[0].mxu0
      %1445 = vmatprep.mubr.f32.mxu0 0.0
      %1446 = vmatmul.mubr.f32.gmra.mrb[0].mxu0 %v1364
      %v1447 = vpop.f32.mrb[0].mxu0
      %v1448 = vadd.f32 0.0, %v1447
      %v1449 = vpop.f32.mrb[0].mxu0
      %1450 = vdwg.mxu0
      %v1452 = vsel %vm1310, %v1329, 0
      %v1455 = vsel %vm1310, %v1330, 0
      %v1458 = vsel %vm1310, %v1331, 0
      %v1461 = vsel %vm1310, %v1332, 0
      %1463 = vmatprep.subr.mxu0 0.0
      %1464 = vmatpush1.msra.mxu0 %v1333
      %1465 = vmatprep.subr.mxu0 0.0
      %1466 = vmatpush1.msra.mxu0 %v1334
      %1467 = vmatprep.subr.mxu0 0.0
      %1468 = vmatpush1.msra.mxu0 %v1335
      %1469 = vmatprep.subr.mxu0 0.0
      %1470 = vmatpush1.msra.mxu0 %v1336
      %1471 = vmatprep.subr.mxu0 0.0
      %1472 = vmatpush1.msra.mxu0 %v1337
      %1473 = vmatprep.subr.mxu0 0.0
      %1474 = vmatpush1.msra.mxu0 %v1338
      %1475 = vmatprep.subr.mxu0 0.0
      %1476 = vmatpush1.msra.mxu0 %v1339
      %1477 = vmatprep.subr.mxu0 0.0
      %1478 = vmatpush1.msra.mxu0 %v1340
      %1479 = vmatprep.subr.mxu0 0.0
      %1480 = vmatpush1.msra.mxu0 0.0
      %1481 = vmatprep.subr.mxu0 0.0
      %1482 = vmatpush1.msra.mxu0 0.0
      %1483 = vmatprep.subr.mxu0 0.0
      %1484 = vmatpush1.msra.mxu0 0.0
      %1485 = vmatprep.subr.mxu0 0.0
      %1486 = vmatpush1.msra.mxu0 0.0
      %1487 = vmatprep.subr.mxu0 0.0
      %1488 = vmatpush1.msra.mxu0 0.0
      %1489 = vmatprep.subr.mxu0 0.0
      %1490 = vmatpush1.msra.mxu0 0.0
      %1491 = vmatprep.subr.mxu0 0.0
      %1492 = vmatpush1.msra.mxu0 0.0
      %1493 = vmatprep.subr.mxu0 0.0
      %1494 = vmatpush1.msra.mxu0 0.0
      %1495 = vmatprep.subr.mxu0 0.0
      %1496 = vmatpush1.msra.mxu0 0.0
      %1497 = vmatprep.subr.mxu0 0.0
      %1498 = vmatpush1.msra.mxu0 0.0
      %1499 = vmatprep.subr.mxu0 0.0
      %1500 = vmatpush1.msra.mxu0 0.0
      %1501 = vmatprep.subr.mxu0 0.0
      %1502 = vmatpush1.msra.mxu0 0.0
      %1503 = vmatprep.subr.mxu0 0.0
      %1504 = vmatpush1.msra.mxu0 0.0
      %1505 = vmatprep.subr.mxu0 0.0
      %1506 = vmatpush1.msra.mxu0 0.0
      %1507 = vmatprep.subr.mxu0 0.0
      %1508 = vmatpush1.msra.mxu0 0.0
      %1509 = vmatprep.subr.mxu0 0.0
      %1510 = vmatpush1.msra.mxu0 0.0
      %1511 = vmatprep.subr.mxu0 0.0
      %1512 = vmatpush1.msra.mxu0 0.0
      %1513 = vmatprep.subr.mxu0 0.0
      %1514 = vmatpush1.msra.mxu0 0.0
      %1515 = vmatprep.subr.mxu0 0.0
      %1516 = vmatpush1.msra.mxu0 0.0
      %1517 = vmatprep.subr.mxu0 0.0
      %1518 = vmatpush1.msra.mxu0 0.0
      %1519 = vmatprep.subr.mxu0 0.0
      %1520 = vmatpush1.msra.mxu0 0.0
      %1521 = vmatprep.subr.mxu0 0.0
      %1522 = vmatpush1.msra.mxu0 0.0
      %1523 = vmatprep.subr.mxu0 0.0
      %1524 = vmatpush1.msra.mxu0 0.0
      %1525 = vmatprep.subr.mxu0 0.0
      %1526 = vmatpush1.msra.mxu0 0.0
      %1527 = vmatprep.mubr.f32.mxu0 0.0
      %1528 = vmatmul.mubr.f32.gmra.mrb[0].mxu0 %v1452
      %v1529 = vpop.f32.mrb[0].mxu0
      %v1530 = vadd.f32 %v1433, %v1529
      %v1531 = vpop.f32.mrb[0].mxu0
      %1532 = vmatprep.mubr.f32.mxu0 0.0
      %1533 = vmatmul.mubr.f32.gmra.mrb[0].mxu0 %v1455
      %v1534 = vpop.f32.mrb[0].mxu0
      %v1535 = vadd.f32 %v1438, %v1534
      %v1536 = vpop.f32.mrb[0].mxu0
      %1537 = vmatprep.mubr.f32.mxu0 0.0
      %1538 = vmatmul.mubr.f32.gmra.mrb[0].mxu0 %v1458
      %v1539 = vpop.f32.mrb[0].mxu0
      %v1540 = vadd.f32 %v1443, %v1539
      %v1541 = vpop.f32.mrb[0].mxu0
      %1542 = vmatprep.mubr.f32.mxu0 0.0
      %1543 = vmatmul.mubr.f32.gmra.mrb[0].mxu0 %v1461
      %v1544 = vpop.f32.mrb[0].mxu0
      %v1545 = vadd.f32 %v1448, %v1544
      %v1546 = vpop.f32.mrb[0].mxu0
      %1547 = vdwg.mxu0
      %v1548 = vld [vmem:[#allocation3 + $0x2] sm:$0xff]
      %v1549 = vld [vmem:[#allocation3 + $0x12] sm:$0xff]
      %v1550 = vld [vmem:[#allocation3 + $0x22] sm:$0xff]
      %v1551 = vld [vmem:[#allocation3 + $0x32] sm:$0xff]
      %s1552 = scalar_lea.vmem %s2, 128
      %v1553 = vld [vmem:[%s1552] sm:$0xff]
      %v1554 = vld [vmem:[%s1552 + $0x8] sm:$0xff]
      %v1555 = vld [vmem:[%s1552 + $0x10] sm:$0xff]
      %v1556 = vld [vmem:[%s1552 + $0x18] sm:$0xff]
      %v1557 = vld [vmem:[%s1552 + $0x20] sm:$0xff]
      %v1558 = vld [vmem:[%s1552 + $0x28] sm:$0xff]
      %v1559 = vld [vmem:[%s1552 + $0x30] sm:$0xff]
      %v1560 = vld [vmem:[%s1552 + $0x38] sm:$0xff]
      %v1562 = vsel %vm1310, %v1548, 0
      %v1565 = vsel %vm1310, %v1549, 0
      %v1568 = vsel %vm1310, %v1550, 0
      %v1571 = vsel %vm1310, %v1551, 0
      %1573 = vmatprep.subr.mxu0 0.0
      %1574 = vmatpush1.msra.mxu0 %v1553
      %1575 = vmatprep.subr.mxu0 0.0
      %1576 = vmatpush1.msra.mxu0 %v1554
      %1577 = vmatprep.subr.mxu0 0.0
      %1578 = vmatpush1.msra.mxu0 %v1555
      %1579 = vmatprep.subr.mxu0 0.0
      %1580 = vmatpush1.msra.mxu0 %v1556
      %1581 = vmatprep.subr.mxu0 0.0
      %1582 = vmatpush1.msra.mxu0 %v1557
      %1583 = vmatprep.subr.mxu0 0.0
      %1584 = vmatpush1.msra.mxu0 %v1558
      %1585 = vmatprep.subr.mxu0 0.0
      %1586 = vmatpush1.msra.mxu0 %v1559
      %1587 = vmatprep.subr.mxu0 0.0
      %1588 = vmatpush1.msra.mxu0 %v1560
      %1589 = vmatprep.subr.mxu0 0.0
      %1590 = vmatpush1.msra.mxu0 0.0
      %1591 = vmatprep.subr.mxu0 0.0
      %1592 = vmatpush1.msra.mxu0 0.0
      %1593 = vmatprep.subr.mxu0 0.0
      %1594 = vmatpush1.msra.mxu0 0.0
      %1595 = vmatprep.subr.mxu0 0.0
      %1596 = vmatpush1.msra.mxu0 0.0
      %1597 = vmatprep.subr.mxu0 0.0
      %1598 = vmatpush1.msra.mxu0 0.0
      %1599 = vmatprep.subr.mxu0 0.0
      %1600 = vmatpush1.msra.mxu0 0.0
      %1601 = vmatprep.subr.mxu0 0.0
      %1602 = vmatpush1.msra.mxu0 0.0
      %1603 = vmatprep.subr.mxu0 0.0
      %1604 = vmatpush1.msra.mxu0 0.0
      %1605 = vmatprep.subr.mxu0 0.0
      %1606 = vmatpush1.msra.mxu0 0.0
      %1607 = vmatprep.subr.mxu0 0.0
      %1608 = vmatpush1.msra.mxu0 0.0
      %1609 = vmatprep.subr.mxu0 0.0
      %1610 = vmatpush1.msra.mxu0 0.0
      %1611 = vmatprep.subr.mxu0 0.0
      %1612 = vmatpush1.msra.mxu0 0.0
      %1613 = vmatprep.subr.mxu0 0.0
      %1614 = vmatpush1.msra.mxu0 0.0
      %1615 = vmatprep.subr.mxu0 0.0
      %1616 = vmatpush1.msra.mxu0 0.0
      %1617 = vmatprep.subr.mxu0 0.0
      %1618 = vmatpush1.msra.mxu0 0.0
      %1619 = vmatprep.subr.mxu0 0.0
      %1620 = vmatpush1.msra.mxu0 0.0
      %1621 = vmatprep.subr.mxu0 0.0
      %1622 = vmatpush1.msra.mxu0 0.0
      %1623 = vmatprep.subr.mxu0 0.0
      %1624 = vmatpush1.msra.mxu0 0.0
      %1625 = vmatprep.subr.mxu0 0.0
      %1626 = vmatpush1.msra.mxu0 0.0
      %1627 = vmatprep.subr.mxu0 0.0
      %1628 = vmatpush1.msra.mxu0 0.0
      %1629 = vmatprep.subr.mxu0 0.0
      %1630 = vmatpush1.msra.mxu0 0.0
      %1631 = vmatprep.subr.mxu0 0.0
      %1632 = vmatpush1.msra.mxu0 0.0
      %1633 = vmatprep.subr.mxu0 0.0
      %1634 = vmatpush1.msra.mxu0 0.0
      %1635 = vmatprep.subr.mxu0 0.0
      %1636 = vmatpush1.msra.mxu0 0.0
      %1637 = vmatprep.mubr.f32.mxu0 0.0
      %1638 = vmatmul.mubr.f32.gmra.mrb[0].mxu0 %v1562
      %v1639 = vpop.f32.mrb[0].mxu0
      %v1640 = vadd.f32 0.0, %v1639
      %v1641 = vpop.f32.mrb[0].mxu0
      %1642 = vmatprep.mubr.f32.mxu0 0.0
      %1643 = vmatmul.mubr.f32.gmra.mrb[0].mxu0 %v1565
      %v1644 = vpop.f32.mrb[0].mxu0
      %v1645 = vadd.f32 0.0, %v1644
      %v1646 = vpop.f32.mrb[0].mxu0
      %1647 = vmatprep.mubr.f32.mxu0 0.0
      %1648 = vmatmul.mubr.f32.gmra.mrb[0].mxu0 %v1568
      %v1649 = vpop.f32.mrb[0].mxu0
      %v1650 = vadd.f32 0.0, %v1649
      %v1651 = vpop.f32.mrb[0].mxu0
      %1652 = vmatprep.mubr.f32.mxu0 0.0
      %1653 = vmatmul.mubr.f32.gmra.mrb[0].mxu0 %v1571
      %v1654 = vpop.f32.mrb[0].mxu0
      %v1655 = vadd.f32 0.0, %v1654
      %v1656 = vpop.f32.mrb[0].mxu0
      %1657 = vdwg.mxu0
      %v1658 = vadd.f32 %v1530, %v1640
      %v1659 = vadd.f32 %v1535, %v1645
      %v1660 = vadd.f32 %v1540, %v1650
      %v1661 = vadd.f32 %v1545, %v1655
      %v1662 = vld [vmem:[%s1324] sm:$0xff]
      %v1663 = vld [vmem:[%s1324 + $0x10] sm:$0xff]
      %v1664 = vld [vmem:[%s1324 + $0x20] sm:$0xff]
      %v1665 = vld [vmem:[%s1324 + $0x30] sm:$0xff]
      %s1666 = scalar_lea.vmem %s2, 192
      %v1667 = vld [vmem:[%s1666] sm:$0xff]
      %v1668 = vld [vmem:[%s1666 + $0x8] sm:$0xff]
      %v1669 = vld [vmem:[%s1666 + $0x10] sm:$0xff]
      %v1670 = vld [vmem:[%s1666 + $0x18] sm:$0xff]
      %v1671 = vld [vmem:[%s1666 + $0x20] sm:$0xff]
      %v1672 = vld [vmem:[%s1666 + $0x28] sm:$0xff]
      %v1673 = vld [vmem:[%s1666 + $0x30] sm:$0xff]
      %v1674 = vld [vmem:[%s1666 + $0x38] sm:$0xff]
      %v1676 = vsel %vm1310, %v1662, 0
      %v1679 = vsel %vm1310, %v1663, 0
      %v1682 = vsel %vm1310, %v1664, 0
      %v1685 = vsel %vm1310, %v1665, 0
      %1687 = vmatprep.subr.mxu0 0.0
      %1688 = vmatpush1.msra.mxu0 %v1667
      %1689 = vmatprep.subr.mxu0 0.0
      %1690 = vmatpush1.msra.mxu0 %v1668
      %1691 = vmatprep.subr.mxu0 0.0
      %1692 = vmatpush1.msra.mxu0 %v1669
      %1693 = vmatprep.subr.mxu0 0.0
      %1694 = vmatpush1.msra.mxu0 %v1670
      %1695 = vmatprep.subr.mxu0 0.0
      %1696 = vmatpush1.msra.mxu0 %v1671
      %1697 = vmatprep.subr.mxu0 0.0
      %1698 = vmatpush1.msra.mxu0 %v1672
      %1699 = vmatprep.subr.mxu0 0.0
      %1700 = vmatpush1.msra.mxu0 %v1673
      %1701 = vmatprep.subr.mxu0 0.0
      %1702 = vmatpush1.msra.mxu0 %v1674
      %1703 = vmatprep.subr.mxu0 0.0
      %1704 = vmatpush1.msra.mxu0 0.0
      %1705 = vmatprep.subr.mxu0 0.0
      %1706 = vmatpush1.msra.mxu0 0.0
      %1707 = vmatprep.subr.mxu0 0.0
      %1708 = vmatpush1.msra.mxu0 0.0
      %1709 = vmatprep.subr.mxu0 0.0
      %1710 = vmatpush1.msra.mxu0 0.0
      %1711 = vmatprep.subr.mxu0 0.0
      %1712 = vmatpush1.msra.mxu0 0.0
      %1713 = vmatprep.subr.mxu0 0.0
      %1714 = vmatpush1.msra.mxu0 0.0
      %1715 = vmatprep.subr.mxu0 0.0
      %1716 = vmatpush1.msra.mxu0 0.0
      %1717 = vmatprep.subr.mxu0 0.0
      %1718 = vmatpush1.msra.mxu0 0.0
      %1719 = vmatprep.subr.mxu0 0.0
      %1720 = vmatpush1.msra.mxu0 0.0
      %1721 = vmatprep.subr.mxu0 0.0
      %1722 = vmatpush1.msra.mxu0 0.0
      %1723 = vmatprep.subr.mxu0 0.0
      %1724 = vmatpush1.msra.mxu0 0.0
      %1725 = vmatprep.subr.mxu0 0.0
      %1726 = vmatpush1.msra.mxu0 0.0
      %1727 = vmatprep.subr.mxu0 0.0
      %1728 = vmatpush1.msra.mxu0 0.0
      %1729 = vmatprep.subr.mxu0 0.0
      %1730 = vmatpush1.msra.mxu0 0.0
      %1731 = vmatprep.subr.mxu0 0.0
      %1732 = vmatpush1.msra.mxu0 0.0
      %1733 = vmatprep.subr.mxu0 0.0
      %1734 = vmatpush1.msra.mxu0 0.0
      %1735 = vmatprep.subr.mxu0 0.0
      %1736 = vmatpush1.msra.mxu0 0.0
      %1737 = vmatprep.subr.mxu0 0.0
      %1738 = vmatpush1.msra.mxu0 0.0
      %1739 = vmatprep.subr.mxu0 0.0
      %1740 = vmatpush1.msra.mxu0 0.0
      %1741 = vmatprep.subr.mxu0 0.0
      %1742 = vmatpush1.msra.mxu0 0.0
      %1743 = vmatprep.subr.mxu0 0.0
      %1744 = vmatpush1.msra.mxu0 0.0
      %1745 = vmatprep.subr.mxu0 0.0
      %1746 = vmatpush1.msra.mxu0 0.0
      %1747 = vmatprep.subr.mxu0 0.0
      %1748 = vmatpush1.msra.mxu0 0.0
      %1749 = vmatprep.subr.mxu0 0.0
      %1750 = vmatpush1.msra.mxu0 0.0
      %1751 = vmatprep.mubr.f32.mxu0 0.0
      %1752 = vmatmul.mubr.f32.gmra.mrb[0].mxu0 %v1676
      %v1753 = vpop.f32.mrb[0].mxu0
      %v1754 = vadd.f32 0.0, %v1753
      %v1755 = vpop.f32.mrb[0].mxu0
      %1756 = vmatprep.mubr.f32.mxu0 0.0
      %1757 = vmatmul.mubr.f32.gmra.mrb[0].mxu0 %v1679
      %v1758 = vpop.f32.mrb[0].mxu0
      %v1759 = vadd.f32 0.0, %v1758
      %v1760 = vpop.f32.mrb[0].mxu0
      %1761 = vmatprep.mubr.f32.mxu0 0.0
      %1762 = vmatmul.mubr.f32.gmra.mrb[0].mxu0 %v1682
      %v1763 = vpop.f32.mrb[0].mxu0
      %v1764 = vadd.f32 0.0, %v1763
      %v1765 = vpop.f32.mrb[0].mxu0
      %1766 = vmatprep.mubr.f32.mxu0 0.0
      %1767 = vmatmul.mubr.f32.gmra.mrb[0].mxu0 %v1685
      %v1768 = vpop.f32.mrb[0].mxu0
      %v1769 = vadd.f32 0.0, %v1768
      %v1770 = vpop.f32.mrb[0].mxu0
      %1771 = vdwg.mxu0
      %v1772 = vadd.f32 %v1658, %v1754
      %v1773 = vadd.f32 %v1659, %v1759
      %v1774 = vadd.f32 %v1660, %v1764
      %v1775 = vadd.f32 %v1661, %v1769
      %v1776 = vld [vmem:[%s1324 + $0x1] sm:$0xff]
      %v1777 = vld [vmem:[%s1324 + $0x11] sm:$0xff]
      %v1778 = vld [vmem:[%s1324 + $0x21] sm:$0xff]
      %v1779 = vld [vmem:[%s1324 + $0x31] sm:$0xff]
      %s1780 = scalar_lea.vmem %s2, 256
      %v1781 = vld [vmem:[%s1780] sm:$0xff]
      %v1782 = vld [vmem:[%s1780 + $0x8] sm:$0xff]
      %v1783 = vld [vmem:[%s1780 + $0x10] sm:$0xff]
      %v1784 = vld [vmem:[%s1780 + $0x18] sm:$0xff]
      %v1785 = vld [vmem:[%s1780 + $0x20] sm:$0xff]
      %v1786 = vld [vmem:[%s1780 + $0x28] sm:$0xff]
      %v1787 = vld [vmem:[%s1780 + $0x30] sm:$0xff]
      %v1788 = vld [vmem:[%s1780 + $0x38] sm:$0xff]
      %v1790 = vsel %vm1310, %v1776, 0
      %v1793 = vsel %vm1310, %v1777, 0
      %v1796 = vsel %vm1310, %v1778, 0
      %v1799 = vsel %vm1310, %v1779, 0
      %1801 = vmatprep.subr.mxu0 0.0
      %1802 = vmatpush1.msra.mxu0 %v1781
      %1803 = vmatprep.subr.mxu0 0.0
      %1804 = vmatpush1.msra.mxu0 %v1782
      %1805 = vmatprep.subr.mxu0 0.0
      %1806 = vmatpush1.msra.mxu0 %v1783
      %1807 = vmatprep.subr.mxu0 0.0
      %1808 = vmatpush1.msra.mxu0 %v1784
      %1809 = vmatprep.subr.mxu0 0.0
      %1810 = vmatpush1.msra.mxu0 %v1785
      %1811 = vmatprep.subr.mxu0 0.0
      %1812 = vmatpush1.msra.mxu0 %v1786
      %1813 = vmatprep.subr.mxu0 0.0
      %1814 = vmatpush1.msra.mxu0 %v1787
      %1815 = vmatprep.subr.mxu0 0.0
      %1816 = vmatpush1.msra.mxu0 %v1788
      %1817 = vmatprep.subr.mxu0 0.0
      %1818 = vmatpush1.msra.mxu0 0.0
      %1819 = vmatprep.subr.mxu0 0.0
      %1820 = vmatpush1.msra.mxu0 0.0
      %1821 = vmatprep.subr.mxu0 0.0
      %1822 = vmatpush1.msra.mxu0 0.0
      %1823 = vmatprep.subr.mxu0 0.0
      %1824 = vmatpush1.msra.mxu0 0.0
      %1825 = vmatprep.subr.mxu0 0.0
      %1826 = vmatpush1.msra.mxu0 0.0
      %1827 = vmatprep.subr.mxu0 0.0
      %1828 = vmatpush1.msra.mxu0 0.0
      %1829 = vmatprep.subr.mxu0 0.0
      %1830 = vmatpush1.msra.mxu0 0.0
      %1831 = vmatprep.subr.mxu0 0.0
      %1832 = vmatpush1.msra.mxu0 0.0
      %1833 = vmatprep.subr.mxu0 0.0
      %1834 = vmatpush1.msra.mxu0 0.0
      %1835 = vmatprep.subr.mxu0 0.0
      %1836 = vmatpush1.msra.mxu0 0.0
      %1837 = vmatprep.subr.mxu0 0.0
      %1838 = vmatpush1.msra.mxu0 0.0
      %1839 = vmatprep.subr.mxu0 0.0
      %1840 = vmatpush1.msra.mxu0 0.0
      %1841 = vmatprep.subr.mxu0 0.0
      %1842 = vmatpush1.msra.mxu0 0.0
      %1843 = vmatprep.subr.mxu0 0.0
      %1844 = vmatpush1.msra.mxu0 0.0
      %1845 = vmatprep.subr.mxu0 0.0
      %1846 = vmatpush1.msra.mxu0 0.0
      %1847 = vmatprep.subr.mxu0 0.0
      %1848 = vmatpush1.msra.mxu0 0.0
      %1849 = vmatprep.subr.mxu0 0.0
      %1850 = vmatpush1.msra.mxu0 0.0
      %1851 = vmatprep.subr.mxu0 0.0
      %1852 = vmatpush1.msra.mxu0 0.0
      %1853 = vmatprep.subr.mxu0 0.0
      %1854 = vmatpush1.msra.mxu0 0.0
      %1855 = vmatprep.subr.mxu0 0.0
      %1856 = vmatpush1.msra.mxu0 0.0
      %1857 = vmatprep.subr.mxu0 0.0
      %1858 = vmatpush1.msra.mxu0 0.0
      %1859 = vmatprep.subr.mxu0 0.0
      %1860 = vmatpush1.msra.mxu0 0.0
      %1861 = vmatprep.subr.mxu0 0.0
      %1862 = vmatpush1.msra.mxu0 0.0
      %1863 = vmatprep.subr.mxu0 0.0
      %1864 = vmatpush1.msra.mxu0 0.0
      %1865 = vmatprep.mubr.f32.mxu0 0.0
      %1866 = vmatmul.mubr.f32.gmra.mrb[0].mxu0 %v1790
      %v1867 = vpop.f32.mrb[0].mxu0
      %v1868 = vadd.f32 0.0, %v1867
      %v1869 = vpop.f32.mrb[0].mxu0
      %1870 = vmatprep.mubr.f32.mxu0 0.0
      %1871 = vmatmul.mubr.f32.gmra.mrb[0].mxu0 %v1793
      %v1872 = vpop.f32.mrb[0].mxu0
      %v1873 = vadd.f32 0.0, %v1872
      %v1874 = vpop.f32.mrb[0].mxu0
      %1875 = vmatprep.mubr.f32.mxu0 0.0
      %1876 = vmatmul.mubr.f32.gmra.mrb[0].mxu0 %v1796
      %v1877 = vpop.f32.mrb[0].mxu0
      %v1878 = vadd.f32 0.0, %v1877
      %v1879 = vpop.f32.mrb[0].mxu0
      %1880 = vmatprep.mubr.f32.mxu0 0.0
      %1881 = vmatmul.mubr.f32.gmra.mrb[0].mxu0 %v1799
      %v1882 = vpop.f32.mrb[0].mxu0
      %v1883 = vadd.f32 0.0, %v1882
      %v1884 = vpop.f32.mrb[0].mxu0
      %1885 = vdwg.mxu0
      %v1886 = vadd.f32 %v1772, %v1868
      %v1887 = vadd.f32 %v1773, %v1873
      %v1888 = vadd.f32 %v1774, %v1878
      %v1889 = vadd.f32 %v1775, %v1883
      %v1890 = vld [vmem:[%s1324 + $0x2] sm:$0xff]
      %v1891 = vld [vmem:[%s1324 + $0x12] sm:$0xff]
      %v1892 = vld [vmem:[%s1324 + $0x22] sm:$0xff]
      %v1893 = vld [vmem:[%s1324 + $0x32] sm:$0xff]
      %s1894 = scalar_lea.vmem %s2, 320
      %v1895 = vld [vmem:[%s1894] sm:$0xff]
      %v1896 = vld [vmem:[%s1894 + $0x8] sm:$0xff]
      %v1897 = vld [vmem:[%s1894 + $0x10] sm:$0xff]
      %v1898 = vld [vmem:[%s1894 + $0x18] sm:$0xff]
      %v1899 = vld [vmem:[%s1894 + $0x20] sm:$0xff]
      %v1900 = vld [vmem:[%s1894 + $0x28] sm:$0xff]
      %v1901 = vld [vmem:[%s1894 + $0x30] sm:$0xff]
      %v1902 = vld [vmem:[%s1894 + $0x38] sm:$0xff]
      %v1904 = vsel %vm1310, %v1890, 0
      %v1907 = vsel %vm1310, %v1891, 0
      %v1910 = vsel %vm1310, %v1892, 0
      %v1913 = vsel %vm1310, %v1893, 0
      %1915 = vmatprep.subr.mxu0 0.0
      %1916 = vmatpush1.msra.mxu0 %v1895
      %1917 = vmatprep.subr.mxu0 0.0
      %1918 = vmatpush1.msra.mxu0 %v1896
      %1919 = vmatprep.subr.mxu0 0.0
      %1920 = vmatpush1.msra.mxu0 %v1897
      %1921 = vmatprep.subr.mxu0 0.0
      %1922 = vmatpush1.msra.mxu0 %v1898
      %1923 = vmatprep.subr.mxu0 0.0
      %1924 = vmatpush1.msra.mxu0 %v1899
      %1925 = vmatprep.subr.mxu0 0.0
      %1926 = vmatpush1.msra.mxu0 %v1900
      %1927 = vmatprep.subr.mxu0 0.0
      %1928 = vmatpush1.msra.mxu0 %v1901
      %1929 = vmatprep.subr.mxu0 0.0
      %1930 = vmatpush1.msra.mxu0 %v1902
      %1931 = vmatprep.subr.mxu0 0.0
      %1932 = vmatpush1.msra.mxu0 0.0
      %1933 = vmatprep.subr.mxu0 0.0
      %1934 = vmatpush1.msra.mxu0 0.0
      %1935 = vmatprep.subr.mxu0 0.0
      %1936 = vmatpush1.msra.mxu0 0.0
      %1937 = vmatprep.subr.mxu0 0.0
      %1938 = vmatpush1.msra.mxu0 0.0
      %1939 = vmatprep.subr.mxu0 0.0
      %1940 = vmatpush1.msra.mxu0 0.0
      %1941 = vmatprep.subr.mxu0 0.0
      %1942 = vmatpush1.msra.mxu0 0.0
      %1943 = vmatprep.subr.mxu0 0.0
      %1944 = vmatpush1.msra.mxu0 0.0
      %1945 = vmatprep.subr.mxu0 0.0
      %1946 = vmatpush1.msra.mxu0 0.0
      %1947 = vmatprep.subr.mxu0 0.0
      %1948 = vmatpush1.msra.mxu0 0.0
      %1949 = vmatprep.subr.mxu0 0.0
      %1950 = vmatpush1.msra.mxu0 0.0
      %1951 = vmatprep.subr.mxu0 0.0
      %1952 = vmatpush1.msra.mxu0 0.0
      %1953 = vmatprep.subr.mxu0 0.0
      %1954 = vmatpush1.msra.mxu0 0.0
      %1955 = vmatprep.subr.mxu0 0.0
      %1956 = vmatpush1.msra.mxu0 0.0
      %1957 = vmatprep.subr.mxu0 0.0
      %1958 = vmatpush1.msra.mxu0 0.0
      %1959 = vmatprep.subr.mxu0 0.0
      %1960 = vmatpush1.msra.mxu0 0.0
      %1961 = vmatprep.subr.mxu0 0.0
      %1962 = vmatpush1.msra.mxu0 0.0
      %1963 = vmatprep.subr.mxu0 0.0
      %1964 = vmatpush1.msra.mxu0 0.0
      %1965 = vmatprep.subr.mxu0 0.0
      %1966 = vmatpush1.msra.mxu0 0.0
      %1967 = vmatprep.subr.mxu0 0.0
      %1968 = vmatpush1.msra.mxu0 0.0
      %1969 = vmatprep.subr.mxu0 0.0
      %1970 = vmatpush1.msra.mxu0 0.0
      %1971 = vmatprep.subr.mxu0 0.0
      %1972 = vmatpush1.msra.mxu0 0.0
      %1973 = vmatprep.subr.mxu0 0.0
      %1974 = vmatpush1.msra.mxu0 0.0
      %1975 = vmatprep.subr.mxu0 0.0
      %1976 = vmatpush1.msra.mxu0 0.0
      %1977 = vmatprep.subr.mxu0 0.0
      %1978 = vmatpush1.msra.mxu0 0.0
      %1979 = vmatprep.mubr.f32.mxu0 0.0
      %1980 = vmatmul.mubr.f32.gmra.mrb[0].mxu0 %v1904
      %v1981 = vpop.f32.mrb[0].mxu0
      %v1982 = vadd.f32 0.0, %v1981
      %v1983 = vpop.f32.mrb[0].mxu0
      %1984 = vmatprep.mubr.f32.mxu0 0.0
      %1985 = vmatmul.mubr.f32.gmra.mrb[0].mxu0 %v1907
      %v1986 = vpop.f32.mrb[0].mxu0
      %v1987 = vadd.f32 0.0, %v1986
      %v1988 = vpop.f32.mrb[0].mxu0
      %1989 = vmatprep.mubr.f32.mxu0 0.0
      %1990 = vmatmul.mubr.f32.gmra.mrb[0].mxu0 %v1910
      %v1991 = vpop.f32.mrb[0].mxu0
      %v1992 = vadd.f32 0.0, %v1991
      %v1993 = vpop.f32.mrb[0].mxu0
      %1994 = vmatprep.mubr.f32.mxu0 0.0
      %1995 = vmatmul.mubr.f32.gmra.mrb[0].mxu0 %v1913
      %v1996 = vpop.f32.mrb[0].mxu0
      %v1997 = vadd.f32 0.0, %v1996
      %v1998 = vpop.f32.mrb[0].mxu0
      %1999 = vdwg.mxu0
      %v2000 = vadd.f32 %v1886, %v1982
      %v2001 = vadd.f32 %v1887, %v1987
      %v2002 = vadd.f32 %v1888, %v1992
      %v2003 = vadd.f32 %v1889, %v1997
      %s2004 = scalar_lea.vmem [#allocation3], 32
      %v2005 = vld [vmem:[%s2004] sm:$0xff]
      %v2006 = vld [vmem:[%s2004 + $0x10] sm:$0xff]
      %v2007 = vld [vmem:[%s2004 + $0x20] sm:$0xff]
      %v2008 = vld [vmem:[%s2004 + $0x30] sm:$0xff]
      %s2009 = scalar_lea.vmem %s2, 384
      %v2010 = vld [vmem:[%s2009] sm:$0xff]
      %v2011 = vld [vmem:[%s2009 + $0x8] sm:$0xff]
      %v2012 = vld [vmem:[%s2009 + $0x10] sm:$0xff]
      %v2013 = vld [vmem:[%s2009 + $0x18] sm:$0xff]
      %v2014 = vld [vmem:[%s2009 + $0x20] sm:$0xff]
      %v2015 = vld [vmem:[%s2009 + $0x28] sm:$0xff]
      %v2016 = vld [vmem:[%s2009 + $0x30] sm:$0xff]
      %v2017 = vld [vmem:[%s2009 + $0x38] sm:$0xff]
      %v2019 = vsel %vm1310, %v2005, 0
      %v2022 = vsel %vm1310, %v2006, 0
      %v2025 = vsel %vm1310, %v2007, 0
      %v2028 = vsel %vm1310, %v2008, 0
      %2030 = vmatprep.subr.mxu0 0.0
      %2031 = vmatpush1.msra.mxu0 %v2010
      %2032 = vmatprep.subr.mxu0 0.0
      %2033 = vmatpush1.msra.mxu0 %v2011
      %2034 = vmatprep.subr.mxu0 0.0
      %2035 = vmatpush1.msra.mxu0 %v2012
      %2036 = vmatprep.subr.mxu0 0.0
      %2037 = vmatpush1.msra.mxu0 %v2013
      %2038 = vmatprep.subr.mxu0 0.0
      %2039 = vmatpush1.msra.mxu0 %v2014
      %2040 = vmatprep.subr.mxu0 0.0
      %2041 = vmatpush1.msra.mxu0 %v2015
      %2042 = vmatprep.subr.mxu0 0.0
      %2043 = vmatpush1.msra.mxu0 %v2016
      %2044 = vmatprep.subr.mxu0 0.0
      %2045 = vmatpush1.msra.mxu0 %v2017
      %2046 = vmatprep.subr.mxu0 0.0
      %2047 = vmatpush1.msra.mxu0 0.0
      %2048 = vmatprep.subr.mxu0 0.0
      %2049 = vmatpush1.msra.mxu0 0.0
      %2050 = vmatprep.subr.mxu0 0.0
      %2051 = vmatpush1.msra.mxu0 0.0
      %2052 = vmatprep.subr.mxu0 0.0
      %2053 = vmatpush1.msra.mxu0 0.0
      %2054 = vmatprep.subr.mxu0 0.0
      %2055 = vmatpush1.msra.mxu0 0.0
      %2056 = vmatprep.subr.mxu0 0.0
      %2057 = vmatpush1.msra.mxu0 0.0
      %2058 = vmatprep.subr.mxu0 0.0
      %2059 = vmatpush1.msra.mxu0 0.0
      %2060 = vmatprep.subr.mxu0 0.0
      %2061 = vmatpush1.msra.mxu0 0.0
      %2062 = vmatprep.subr.mxu0 0.0
      %2063 = vmatpush1.msra.mxu0 0.0
      %2064 = vmatprep.subr.mxu0 0.0
      %2065 = vmatpush1.msra.mxu0 0.0
      %2066 = vmatprep.subr.mxu0 0.0
      %2067 = vmatpush1.msra.mxu0 0.0
      %2068 = vmatprep.subr.mxu0 0.0
      %2069 = vmatpush1.msra.mxu0 0.0
      %2070 = vmatprep.subr.mxu0 0.0
      %2071 = vmatpush1.msra.mxu0 0.0
      %2072 = vmatprep.subr.mxu0 0.0
      %2073 = vmatpush1.msra.mxu0 0.0
      %2074 = vmatprep.subr.mxu0 0.0
      %2075 = vmatpush1.msra.mxu0 0.0
      %2076 = vmatprep.subr.mxu0 0.0
      %2077 = vmatpush1.msra.mxu0 0.0
      %2078 = vmatprep.subr.mxu0 0.0
      %2079 = vmatpush1.msra.mxu0 0.0
      %2080 = vmatprep.subr.mxu0 0.0
      %2081 = vmatpush1.msra.mxu0 0.0
      %2082 = vmatprep.subr.mxu0 0.0
      %2083 = vmatpush1.msra.mxu0 0.0
      %2084 = vmatprep.subr.mxu0 0.0
      %2085 = vmatpush1.msra.mxu0 0.0
      %2086 = vmatprep.subr.mxu0 0.0
      %2087 = vmatpush1.msra.mxu0 0.0
      %2088 = vmatprep.subr.mxu0 0.0
      %2089 = vmatpush1.msra.mxu0 0.0
      %2090 = vmatprep.subr.mxu0 0.0
      %2091 = vmatpush1.msra.mxu0 0.0
      %2092 = vmatprep.subr.mxu0 0.0
      %2093 = vmatpush1.msra.mxu0 0.0
      %2094 = vmatprep.mubr.f32.mxu0 0.0
      %2095 = vmatmul.mubr.f32.gmra.mrb[0].mxu0 %v2019
      %v2096 = vpop.f32.mrb[0].mxu0
      %v2097 = vadd.f32 0.0, %v2096
      %v2098 = vpop.f32.mrb[0].mxu0
      %2099 = vmatprep.mubr.f32.mxu0 0.0
      %2100 = vmatmul.mubr.f32.gmra.mrb[0].mxu0 %v2022
      %v2101 = vpop.f32.mrb[0].mxu0
      %v2102 = vadd.f32 0.0, %v2101
      %v2103 = vpop.f32.mrb[0].mxu0
      %2104 = vmatprep.mubr.f32.mxu0 0.0
      %2105 = vmatmul.mubr.f32.gmra.mrb[0].mxu0 %v2025
      %v2106 = vpop.f32.mrb[0].mxu0
      %v2107 = vadd.f32 0.0, %v2106
      %v2108 = vpop.f32.mrb[0].mxu0
      %2109 = vmatprep.mubr.f32.mxu0 0.0
      %2110 = vmatmul.mubr.f32.gmra.mrb[0].mxu0 %v2028
      %v2111 = vpop.f32.mrb[0].mxu0
      %v2112 = vadd.f32 0.0, %v2111
      %v2113 = vpop.f32.mrb[0].mxu0
      %2114 = vdwg.mxu0
      %v2115 = vadd.f32 %v2000, %v2097
      %v2116 = vadd.f32 %v2001, %v2102
      %v2117 = vadd.f32 %v2002, %v2107
      %v2118 = vadd.f32 %v2003, %v2112
      %v2119 = vld [vmem:[%s2004 + $0x1] sm:$0xff]
      %v2120 = vld [vmem:[%s2004 + $0x11] sm:$0xff]
      %v2121 = vld [vmem:[%s2004 + $0x21] sm:$0xff]
      %v2122 = vld [vmem:[%s2004 + $0x31] sm:$0xff]
      %s2123 = scalar_lea.vmem %s2, 448
      %v2124 = vld [vmem:[%s2123] sm:$0xff]
      %v2125 = vld [vmem:[%s2123 + $0x8] sm:$0xff]
      %v2126 = vld [vmem:[%s2123 + $0x10] sm:$0xff]
      %v2127 = vld [vmem:[%s2123 + $0x18] sm:$0xff]
      %v2128 = vld [vmem:[%s2123 + $0x20] sm:$0xff]
      %v2129 = vld [vmem:[%s2123 + $0x28] sm:$0xff]
      %v2130 = vld [vmem:[%s2123 + $0x30] sm:$0xff]
      %v2131 = vld [vmem:[%s2123 + $0x38] sm:$0xff]
      %v2133 = vsel %vm1310, %v2119, 0
      %v2136 = vsel %vm1310, %v2120, 0
      %v2139 = vsel %vm1310, %v2121, 0
      %v2142 = vsel %vm1310, %v2122, 0
      %2144 = vmatprep.subr.mxu0 0.0
      %2145 = vmatpush1.msra.mxu0 %v2124
      %2146 = vmatprep.subr.mxu0 0.0
      %2147 = vmatpush1.msra.mxu0 %v2125
      %2148 = vmatprep.subr.mxu0 0.0
      %2149 = vmatpush1.msra.mxu0 %v2126
      %2150 = vmatprep.subr.mxu0 0.0
      %2151 = vmatpush1.msra.mxu0 %v2127
      %2152 = vmatprep.subr.mxu0 0.0
      %2153 = vmatpush1.msra.mxu0 %v2128
      %2154 = vmatprep.subr.mxu0 0.0
      %2155 = vmatpush1.msra.mxu0 %v2129
      %2156 = vmatprep.subr.mxu0 0.0
      %2157 = vmatpush1.msra.mxu0 %v2130
      %2158 = vmatprep.subr.mxu0 0.0
      %2159 = vmatpush1.msra.mxu0 %v2131
      %2160 = vmatprep.subr.mxu0 0.0
      %2161 = vmatpush1.msra.mxu0 0.0
      %2162 = vmatprep.subr.mxu0 0.0
      %2163 = vmatpush1.msra.mxu0 0.0
      %2164 = vmatprep.subr.mxu0 0.0
      %2165 = vmatpush1.msra.mxu0 0.0
      %2166 = vmatprep.subr.mxu0 0.0
      %2167 = vmatpush1.msra.mxu0 0.0
      %2168 = vmatprep.subr.mxu0 0.0
      %2169 = vmatpush1.msra.mxu0 0.0
      %2170 = vmatprep.subr.mxu0 0.0
      %2171 = vmatpush1.msra.mxu0 0.0
      %2172 = vmatprep.subr.mxu0 0.0
      %2173 = vmatpush1.msra.mxu0 0.0
      %2174 = vmatprep.subr.mxu0 0.0
      %2175 = vmatpush1.msra.mxu0 0.0
      %2176 = vmatprep.subr.mxu0 0.0
      %2177 = vmatpush1.msra.mxu0 0.0
      %2178 = vmatprep.subr.mxu0 0.0
      %2179 = vmatpush1.msra.mxu0 0.0
      %2180 = vmatprep.subr.mxu0 0.0
      %2181 = vmatpush1.msra.mxu0 0.0
      %2182 = vmatprep.subr.mxu0 0.0
      %2183 = vmatpush1.msra.mxu0 0.0
      %2184 = vmatprep.subr.mxu0 0.0
      %2185 = vmatpush1.msra.mxu0 0.0
      %2186 = vmatprep.subr.mxu0 0.0
      %2187 = vmatpush1.msra.mxu0 0.0
      %2188 = vmatprep.subr.mxu0 0.0
      %2189 = vmatpush1.msra.mxu0 0.0
      %2190 = vmatprep.subr.mxu0 0.0
      %2191 = vmatpush1.msra.mxu0 0.0
      %2192 = vmatprep.subr.mxu0 0.0
      %2193 = vmatpush1.msra.mxu0 0.0
      %2194 = vmatprep.subr.mxu0 0.0
      %2195 = vmatpush1.msra.mxu0 0.0
      %2196 = vmatprep.subr.mxu0 0.0
      %2197 = vmatpush1.msra.mxu0 0.0
      %2198 = vmatprep.subr.mxu0 0.0
      %2199 = vmatpush1.msra.mxu0 0.0
      %2200 = vmatprep.subr.mxu0 0.0
      %2201 = vmatpush1.msra.mxu0 0.0
      %2202 = vmatprep.subr.mxu0 0.0
      %2203 = vmatpush1.msra.mxu0 0.0
      %2204 = vmatprep.subr.mxu0 0.0
      %2205 = vmatpush1.msra.mxu0 0.0
      %2206 = vmatprep.subr.mxu0 0.0
      %2207 = vmatpush1.msra.mxu0 0.0
      %2208 = vmatprep.mubr.f32.mxu0 0.0
      %2209 = vmatmul.mubr.f32.gmra.mrb[0].mxu0 %v2133
      %v2210 = vpop.f32.mrb[0].mxu0
      %v2211 = vadd.f32 0.0, %v2210
      %v2212 = vpop.f32.mrb[0].mxu0
      %2213 = vmatprep.mubr.f32.mxu0 0.0
      %2214 = vmatmul.mubr.f32.gmra.mrb[0].mxu0 %v2136
      %v2215 = vpop.f32.mrb[0].mxu0
      %v2216 = vadd.f32 0.0, %v2215
      %v2217 = vpop.f32.mrb[0].mxu0
      %2218 = vmatprep.mubr.f32.mxu0 0.0
      %2219 = vmatmul.mubr.f32.gmra.mrb[0].mxu0 %v2139
      %v2220 = vpop.f32.mrb[0].mxu0
      %v2221 = vadd.f32 0.0, %v2220
      %v2222 = vpop.f32.mrb[0].mxu0
      %2223 = vmatprep.mubr.f32.mxu0 0.0
      %2224 = vmatmul.mubr.f32.gmra.mrb[0].mxu0 %v2142
      %v2225 = vpop.f32.mrb[0].mxu0
      %v2226 = vadd.f32 0.0, %v2225
      %v2227 = vpop.f32.mrb[0].mxu0
      %2228 = vdwg.mxu0
      %v2229 = vadd.f32 %v2115, %v2211
      %v2230 = vadd.f32 %v2116, %v2216
      %v2231 = vadd.f32 %v2117, %v2221
      %v2232 = vadd.f32 %v2118, %v2226
      %v2233 = vld [vmem:[%s2004 + $0x2] sm:$0xff]
      %v2234 = vld [vmem:[%s2004 + $0x12] sm:$0xff]
      %v2235 = vld [vmem:[%s2004 + $0x22] sm:$0xff]
      %v2236 = vld [vmem:[%s2004 + $0x32] sm:$0xff]
      %s2237 = scalar_lea.vmem %s2, 512
      %v2238 = vld [vmem:[%s2237] sm:$0xff]
      %v2239 = vld [vmem:[%s2237 + $0x8] sm:$0xff]
      %v2240 = vld [vmem:[%s2237 + $0x10] sm:$0xff]
      %v2241 = vld [vmem:[%s2237 + $0x18] sm:$0xff]
      %v2242 = vld [vmem:[%s2237 + $0x20] sm:$0xff]
      %v2243 = vld [vmem:[%s2237 + $0x28] sm:$0xff]
      %v2244 = vld [vmem:[%s2237 + $0x30] sm:$0xff]
      %v2245 = vld [vmem:[%s2237 + $0x38] sm:$0xff]
      %v2247 = vsel %vm1310, %v2233, 0
      %v2250 = vsel %vm1310, %v2234, 0
      %v2253 = vsel %vm1310, %v2235, 0
      %v2256 = vsel %vm1310, %v2236, 0
      %2258 = vmatprep.subr.mxu0 0.0
      %2259 = vmatpush1.msra.mxu0 %v2238
      %2260 = vmatprep.subr.mxu0 0.0
      %2261 = vmatpush1.msra.mxu0 %v2239
      %2262 = vmatprep.subr.mxu0 0.0
      %2263 = vmatpush1.msra.mxu0 %v2240
      %2264 = vmatprep.subr.mxu0 0.0
      %2265 = vmatpush1.msra.mxu0 %v2241
      %2266 = vmatprep.subr.mxu0 0.0
      %2267 = vmatpush1.msra.mxu0 %v2242
      %2268 = vmatprep.subr.mxu0 0.0
      %2269 = vmatpush1.msra.mxu0 %v2243
      %2270 = vmatprep.subr.mxu0 0.0
      %2271 = vmatpush1.msra.mxu0 %v2244
      %2272 = vmatprep.subr.mxu0 0.0
      %2273 = vmatpush1.msra.mxu0 %v2245
      %2274 = vmatprep.subr.mxu0 0.0
      %2275 = vmatpush1.msra.mxu0 0.0
      %2276 = vmatprep.subr.mxu0 0.0
      %2277 = vmatpush1.msra.mxu0 0.0
      %2278 = vmatprep.subr.mxu0 0.0
      %2279 = vmatpush1.msra.mxu0 0.0
      %2280 = vmatprep.subr.mxu0 0.0
      %2281 = vmatpush1.msra.mxu0 0.0
      %2282 = vmatprep.subr.mxu0 0.0
      %2283 = vmatpush1.msra.mxu0 0.0
      %2284 = vmatprep.subr.mxu0 0.0
      %2285 = vmatpush1.msra.mxu0 0.0
      %2286 = vmatprep.subr.mxu0 0.0
      %2287 = vmatpush1.msra.mxu0 0.0
      %2288 = vmatprep.subr.mxu0 0.0
      %2289 = vmatpush1.msra.mxu0 0.0
      %2290 = vmatprep.subr.mxu0 0.0
      %2291 = vmatpush1.msra.mxu0 0.0
      %2292 = vmatprep.subr.mxu0 0.0
      %2293 = vmatpush1.msra.mxu0 0.0
      %2294 = vmatprep.subr.mxu0 0.0
      %2295 = vmatpush1.msra.mxu0 0.0
      %2296 = vmatprep.subr.mxu0 0.0
      %2297 = vmatpush1.msra.mxu0 0.0
      %2298 = vmatprep.subr.mxu0 0.0
      %2299 = vmatpush1.msra.mxu0 0.0
      %2300 = vmatprep.subr.mxu0 0.0
      %2301 = vmatpush1.msra.mxu0 0.0
      %2302 = vmatprep.subr.mxu0 0.0
      %2303 = vmatpush1.msra.mxu0 0.0
      %2304 = vmatprep.subr.mxu0 0.0
      %2305 = vmatpush1.msra.mxu0 0.0
      %2306 = vmatprep.subr.mxu0 0.0
      %2307 = vmatpush1.msra.mxu0 0.0
      %2308 = vmatprep.subr.mxu0 0.0
      %2309 = vmatpush1.msra.mxu0 0.0
      %2310 = vmatprep.subr.mxu0 0.0
      %2311 = vmatpush1.msra.mxu0 0.0
      %2312 = vmatprep.subr.mxu0 0.0
      %2313 = vmatpush1.msra.mxu0 0.0
      %2314 = vmatprep.subr.mxu0 0.0
      %2315 = vmatpush1.msra.mxu0 0.0
      %2316 = vmatprep.subr.mxu0 0.0
      %2317 = vmatpush1.msra.mxu0 0.0
      %2318 = vmatprep.subr.mxu0 0.0
      %2319 = vmatpush1.msra.mxu0 0.0
      %2320 = vmatprep.subr.mxu0 0.0
      %2321 = vmatpush1.msra.mxu0 0.0
      %2322 = vmatprep.mubr.f32.mxu0 0.0
      %2323 = vmatmul.mubr.f32.gmra.mrb[0].mxu0 %v2247
      %v2324 = vpop.f32.mrb[0].mxu0
      %v2325 = vadd.f32 0.0, %v2324
      %v2326 = vpop.f32.mrb[0].mxu0
      %2327 = vmatprep.mubr.f32.mxu0 0.0
      %2328 = vmatmul.mubr.f32.gmra.mrb[0].mxu0 %v2250
      %v2329 = vpop.f32.mrb[0].mxu0
      %v2330 = vadd.f32 0.0, %v2329
      %v2331 = vpop.f32.mrb[0].mxu0
      %2332 = vmatprep.mubr.f32.mxu0 0.0
      %2333 = vmatmul.mubr.f32.gmra.mrb[0].mxu0 %v2253
      %v2334 = vpop.f32.mrb[0].mxu0
      %v2335 = vadd.f32 0.0, %v2334
      %v2336 = vpop.f32.mrb[0].mxu0
      %2337 = vmatprep.mubr.f32.mxu0 0.0
      %2338 = vmatmul.mubr.f32.gmra.mrb[0].mxu0 %v2256
      %v2339 = vpop.f32.mrb[0].mxu0
      %v2340 = vadd.f32 0.0, %v2339
      %v2341 = vpop.f32.mrb[0].mxu0
      %2342 = vdwg.mxu0
      %v2343 = vadd.f32 %v2229, %v2325
      %v2344 = vadd.f32 %v2230, %v2330
      %v2345 = vadd.f32 %v2231, %v2335
      %v2346 = vadd.f32 %v2232, %v2340
      %v2347 = vld [vmem:[%s5] sm:$0x1]
      %v2349 = vlaneseq
      %v2350 = vshrl.u32 %v2349, 7
      %v2351 = vsub.s32 0, %v2350
      %v2352 = vrot.slane %v2347, %v2351
      %v2354 = vmul.f32 %v2343, %v2352
      %v2355 = vmul.f32 %v2344, %v2352
      %v2356 = vmul.f32 %v2345, %v2352
      %v2357 = vmul.f32 %v2346, %v2352
      %v2358 = vld [vmem:[%s6] sm:$0x1]
      %v2360 = vlaneseq
      %v2361 = vshrl.u32 %v2360, 7
      %v2362 = vsub.s32 0, %v2361
      %v2363 = vrot.slane %v2358, %v2362
      %v2365 = vadd.f32 %v2354, %v2363
      %v2366 = vadd.f32 %v2355, %v2363
      %v2367 = vadd.f32 %v2356, %v2363
      %v2368 = vadd.f32 %v2357, %v2363
      %v2369 = vmax.f32 %v2365, 0.0
      %v2370 = vmax.f32 %v2366, 0.0
      %v2371 = vmax.f32 %v2367, 0.0
      %v2372 = vmax.f32 %v2368, 0.0
      %2373 = vst.msk [vmem:[%s278] sm:$0xff] %vm1310, %v2369
      %2374 = vst.msk [vmem:[%s278 + $0x8] sm:$0xff] %vm1310, %v2370
      %2375 = vst.msk [vmem:[%s278 + $0x10] sm:$0xff] %vm1310, %v2371
      %2376 = vst.msk [vmem:[%s278 + $0x18] sm:$0xff] %vm1310, %v2372
      %p2377 = scmp.lt.s32.totalorder %s18, 1
      %s2378 = scalar_select %p2377, %s18, 1
      %s2379 = smul.addr %s2378, 4
      %s2380 = smul.addr %s2379, 8
      %s2381 = scalar_lea.vmem %s7, %s2380
      // Predicated region
      $region49: #{inconv_forward.1} parent=47 // pred_check
        %p2382 = pneg %p188
      $region50: #{inconv_forward.1} parent=47 // pred_check_branch
        %2384 = sbr.rel (%p2382) target = $region52
      $region51: #{inconv_forward.1} parent=47 // pred_region
        _
      $region52: #{inconv_forward.1} parent=47 // pred_fallthru
        _
    $region48: #{inconv_forward.1} parent=5 // pred_fallthru
      _
    %p2385 = scmp.le.s32.totalorder 2, %s13
    // Predicated region
    $region53: #{inconv_forward.1} parent=5 // pred_check
      %p2386 = pneg %p2385
    $region54: #{inconv_forward.1} parent=5 // pred_check_branch
      %2388 = sbr.rel (%p2386) target = $region56
    $region55: #{inconv_forward.1} parent=5 // pred_region
      %s2389 = ssub.s32 %s13, 2
      // Predicated region
      $region57: #{inconv_forward.1} parent=55 // pred_check
        %p2390 = pneg %p194
      $region58: #{inconv_forward.1} parent=55 // pred_check_branch
        %2392 = sbr.rel (%p2390) target = $region60
      $region59: #{inconv_forward.1} parent=55 // pred_region
        %p2393 = scmp.lt.s32.totalorder %s19, 1
        %s2394 = scalar_select %p2393, %s19, 1
        %s2395 = smul.addr %s2394, 4
        %s2396 = smul.addr %s2395, 8
        %s2397 = scalar_lea.vmem %s7, %s2396
      $region60: #{inconv_forward.1} parent=55 // pred_fallthru
        _
    $region56: #{inconv_forward.1} parent=5 // pred_fallthru
      _
  $region6: #{inconv_forward.1} parent=0 // loop_footer
    %s17 = sadd.s32 1, %s13
  $region7: #{inconv_forward.1} parent=0 // loop_footer_branch
    %12 = sbr.rel target = $region3
  $region8: #{inconv_forward.1} parent=0 // loop_exit
    _

</llo_original>
